<compile_context>
chip_gen: v6e
topology: v6e:2x2x1
jax: 0.10.0
libtpu: 0.0.40
codegen_flags: <defaults>
</compile_context>

<pallas_src>
import jax
import jax.numpy as jnp
from jax import lax
from jax.experimental import pallas as pl
from jax.experimental.pallas import tpu as pltpu

_EPS = 1e-5  # PyTorch BatchNorm2d default eps


def _bn_train(h, gamma, beta):
    """Training-mode BatchNorm over rows of h:(N, C); one-pass biased moments."""
    n = h.shape[0]
    mean = jnp.sum(h, axis=0, keepdims=True) * (1.0 / n)
    var = jnp.sum(h * h, axis=0, keepdims=True) * (1.0 / n) - mean * mean
    var = jnp.maximum(var, 0.0)
    return (h - mean) * lax.rsqrt(var + _EPS) * gamma + beta


def _down_kernel(xp_ref, w1_ref, w2_ref, wr_ref, br_ref,
                 g1_ref, bt1_ref, g2_ref, bt2_ref,
                 o_ref, h1p_ref):
    # xp_ref : (B, Hp+2, Wp+2, Cin)  pooled + zero-padded input (padding=1), f32
    # w1_ref : (9*Cin,  Cout) bf16   im2col conv1 weights
    # w2_ref : (9*Cout, Cout) bf16   im2col conv2 weights
    # wr_ref : (Cin, Cout)    bf16   1x1 residual conv weights
    # br_ref / g* / bt* : (1, Cout) f32
    # o_ref  : (B, Hp, Wp, Cout) f32
    # h1p_ref: (B, Hp+2, Wp+2, Cout) f32 VMEM scratch (padded h1 for conv2)
    B, Hpp, Wpp, Cin = xp_ref.shape
    Hp, Wp = Hpp - 2, Wpp - 2
    Cout = o_ref.shape[-1]
    N = B * Hp * Wp

    xp = xp_ref[...]                                         # single VMEM read

    def im2col(v, c):
        # v: (B, Hp+2, Wp+2, c) -> (N, 9*c) patch matrix, bf16 for the MXU
        taps = [v[:, dy:dy + Hp, dx:dx + Wp, :].reshape(N, c)
                for dy in range(3) for dx in range(3)]
        return jnp.concatenate(taps, axis=-1).astype(jnp.bfloat16)

    # ---- conv1 (3x3, pad=1) -> BN1 -> ReLU  (bias cancelled by batch-mean) ----
    h1 = jnp.dot(im2col(xp, Cin), w1_ref[...],
                 preferred_element_type=jnp.float32)          # (N, Cout)
    h1 = jnp.maximum(_bn_train(h1, g1_ref[...], bt1_ref[...]), 0.0)

    # ---- conv2 (3x3, pad=1) -> BN2 ----
    h1p_ref[...] = jnp.zeros_like(h1p_ref)
    h1p_ref[:, 1:Hp + 1, 1:Wp + 1, :] = h1.reshape(B, Hp, Wp, Cout)
    h2 = jnp.dot(im2col(h1p_ref[...], Cout), w2_ref[...],
                 preferred_element_type=jnp.float32)          # (N, Cout)
    h2 = _bn_train(h2, g2_ref[...], bt2_ref[...])

    # ---- residual 1x1 conv, add, final ReLU ----
    pooled = xp[:, 1:Hp + 1, 1:Wp + 1, :].reshape(N, Cin).astype(jnp.bfloat16)
    res = jnp.dot(pooled, wr_ref[...],
                  preferred_element_type=jnp.float32) + br_ref[...]
    out = jnp.maximum(h2 + res, 0.0)
    o_ref[...] = out.reshape(B, Hp, Wp, Cout).astype(o_ref.dtype)


def down_forward(x_nchw, params):
    """Down.forward.  x_nchw: (B, Cin, H, W) float32 -> (B, Cout, H//2, W//2)."""
    B, Cin, H, W = x_nchw.shape
    Cout = params["w1"].shape[0]
    Hp, Wp = H // 2, W // 2

    x = jnp.transpose(x_nchw, (0, 2, 3, 1)).astype(jnp.float32)        # NHWC
    x = x[:, :2 * Hp, :2 * Wp, :]                                      # MaxPool2d(2) floors odd H/W
    pooled = jnp.max(x.reshape(B, Hp, 2, Wp, 2, Cin), axis=(2, 4))     # 2x2 max-pool in wrapper
    xp = jnp.pad(pooled, ((0, 0), (1, 1), (1, 1), (0, 0)))             # pad=1 once, in HBM

    # im2col weight layout: OIHW -> (ky, kx, cin, cout) -> (9*cin, cout); bf16 for MXU.
    w1 = jnp.transpose(params["w1"], (2, 3, 1, 0)).reshape(9 * Cin, Cout).astype(jnp.bfloat16)
    w2 = jnp.transpose(params["w2"], (2, 3, 1, 0)).reshape(9 * Cout, Cout).astype(jnp.bfloat16)
    wr = jnp.transpose(params["wr"][:, :, 0, 0], (1, 0)).astype(jnp.bfloat16)
    row = lambda v: v.reshape(1, -1).astype(jnp.float32)
    # conv biases b1/b2 are intentionally not passed: training-mode BN cancels them.

    # TODO(synk): at real UNet sizes this needs a tiled grid (batch/row tiles with a
    # 1-row halo, "parallel" semantics for v7x megacore) plus a two-pass BN
    # (stats kernel + normalize kernel); at demo scale the whole layer fits in VMEM.
    out_nhwc = pl.pallas_call(
        _down_kernel,
        out_shape=jax.ShapeDtypeStruct((B, Hp, Wp, Cout), jnp.float32),
        in_specs=[pl.BlockSpec(memory_space=pltpu.MemorySpace.VMEM)] * 9,
        out_specs=pl.BlockSpec(memory_space=pltpu.MemorySpace.VMEM),
        scratch_shapes=[pltpu.VMEM((B, Hp + 2, Wp + 2, Cout), jnp.float32)],
        compiler_params=pltpu.CompilerParams(vmem_limit_bytes=32 * 1024 * 1024),
    )(xp, w1, w2, wr, row(params["br"]),
      row(params["g1"]), row(params["bt1"]), row(params["g2"]), row(params["bt2"]))

    return jnp.transpose(out_nhwc, (0, 3, 1, 2))                       # back to NCHW


# ------------------------- pure-JAX reference (NCHW) -------------------------
def ref_forward(x, p):
    """Reference; convs use bf16 inputs / f32 accumulation to match the kernel's MXU path."""
    pooled = jnp.maximum(jnp.maximum(x[:, :, 0::2, 0::2], x[:, :, 0::2, 1::2]),
                         jnp.maximum(x[:, :, 1::2, 0::2], x[:, :, 1::2, 1::2]))

    def conv(h, w, b, pad):
        y = lax.conv_general_dilated(h.astype(jnp.bfloat16), w.astype(jnp.bfloat16),
                                     (1, 1), [(pad, pad), (pad, pad)],
                                     dimension_numbers=("NCHW", "OIHW", "NCHW"),
                                     preferred_element_type=jnp.float32)
        return y + b[None, :, None, None]

    def bn(h, g, bt):
        mean = jnp.mean(h, axis=(0, 2, 3), keepdims=True)
        var = jnp.mean((h - mean) ** 2, axis=(0, 2, 3), keepdims=True)
        return (h - mean) / jnp.sqrt(var + _EPS) * g[None, :, None, None] \
               + bt[None, :, None, None]

    h = conv(pooled, p["w1"], p["b1"], 1)
    h = jnp.maximum(bn(h, p["g1"], p["bt1"]), 0.0)
    h = conv(h, p["w2"], p["b2"], 1)
    h = bn(h, p["g2"], p["bt2"])
    res = conv(pooled, p["wr"], p["br"], 0)
    return jnp.maximum(h + res, 0.0)


def init_params(key, cin, cout):
    ks = jax.random.split(key, 8)
    return {
        "w1": 0.2 * jax.random.normal(ks[0], (cout, cin, 3, 3), jnp.float32),
        "b1": 0.1 * jax.random.normal(ks[1], (cout,), jnp.float32),
        "w2": 0.2 * jax.random.normal(ks[2], (cout, cout, 3, 3), jnp.float32),
        "b2": 0.1 * jax.random.normal(ks[3], (cout,), jnp.float32),
        "wr": 0.2 * jax.random.normal(ks[4], (cout, cin, 1, 1), jnp.float32),
        "br": 0.1 * jax.random.normal(ks[5], (cout,), jnp.float32),
        "g1": 1.0 + 0.1 * jax.random.normal(ks[6], (cout,), jnp.float32),
        "bt1": jnp.full((cout,), 0.05, jnp.float32),
        "g2": jnp.ones((cout,), jnp.float32),
        "bt2": 0.1 * jax.random.normal(ks[7], (cout,), jnp.float32),
    }


if __name__ == "__main__":
    key = jax.random.PRNGKey(0)
    kx, kp = jax.random.split(key)
    B, Cin, Cout, H, W = 2, 4, 8, 16, 16

    x = jax.random.normal(kx, (B, Cin, H, W), jnp.float32)
    params = init_params(kp, Cin, Cout)

    out = jax.block_until_ready(down_forward(x, params))
    ref = jax.block_until_ready(ref_forward(x, params))

    assert out.shape == (B, Cout, H // 2, W // 2), out.shape
    err = float(jnp.max(jnp.abs(out - ref)))
    assert jnp.allclose(out, ref, atol=5e-3, rtol=5e-3), f"max abs err {err}"
    print("KERNEL_OK")
</pallas_src>

<mosaic_0001>
module attributes {stable_mosaic.version = 11 : i64} {
  func.func @_down_kernel(%arg0: memref<2x10x10x4xf32, #tpu.memory_space<vmem>>, %arg1: memref<36x8xbf16, #tpu.memory_space<vmem>>, %arg2: memref<72x8xbf16, #tpu.memory_space<vmem>>, %arg3: memref<4x8xbf16, #tpu.memory_space<vmem>>, %arg4: memref<1x8xf32, #tpu.memory_space<vmem>>, %arg5: memref<1x8xf32, #tpu.memory_space<vmem>>, %arg6: memref<1x8xf32, #tpu.memory_space<vmem>>, %arg7: memref<1x8xf32, #tpu.memory_space<vmem>>, %arg8: memref<1x8xf32, #tpu.memory_space<vmem>>, %arg9: memref<2x8x8x8xf32, #tpu.memory_space<vmem>>, %arg10: memref<2x10x10x8xf32, #tpu.memory_space<vmem>>) attributes {dimension_semantics = [], scalar_prefetch = 0 : i64, scratch_operands = 1 : i64, tpu.core_type = #tpu.core_type<tc>} {
    %c0 = arith.constant 0 : index
    %c0_0 = arith.constant 0 : index
    %c0_1 = arith.constant 0 : index
    %c0_2 = arith.constant 0 : index
    %0 = vector.load %arg0[%c0, %c0_0, %c0_1, %c0_2] : memref<2x10x10x4xf32, #tpu.memory_space<vmem>>, vector<2x10x10x4xf32>
    %1 = vector.extract_strided_slice %0 {offsets = [0, 0, 0, 0], sizes = [2, 8, 8, 4], strides = [1, 1, 1, 1]} : vector<2x10x10x4xf32> to vector<2x8x8x4xf32>
    %2 = vector.shape_cast %1 : vector<2x8x8x4xf32> to vector<128x4xf32>
    %3 = vector.extract_strided_slice %0 {offsets = [0, 0, 1, 0], sizes = [2, 8, 8, 4], strides = [1, 1, 1, 1]} : vector<2x10x10x4xf32> to vector<2x8x8x4xf32>
    %4 = vector.shape_cast %3 : vector<2x8x8x4xf32> to vector<128x4xf32>
    %5 = vector.extract_strided_slice %0 {offsets = [0, 0, 2, 0], sizes = [2, 8, 8, 4], strides = [1, 1, 1, 1]} : vector<2x10x10x4xf32> to vector<2x8x8x4xf32>
    %6 = vector.shape_cast %5 : vector<2x8x8x4xf32> to vector<128x4xf32>
    %7 = vector.extract_strided_slice %0 {offsets = [0, 1, 0, 0], sizes = [2, 8, 8, 4], strides = [1, 1, 1, 1]} : vector<2x10x10x4xf32> to vector<2x8x8x4xf32>
    %8 = vector.shape_cast %7 : vector<2x8x8x4xf32> to vector<128x4xf32>
    %9 = vector.extract_strided_slice %0 {offsets = [0, 1, 1, 0], sizes = [2, 8, 8, 4], strides = [1, 1, 1, 1]} : vector<2x10x10x4xf32> to vector<2x8x8x4xf32>
    %10 = vector.shape_cast %9 : vector<2x8x8x4xf32> to vector<128x4xf32>
    %11 = vector.extract_strided_slice %0 {offsets = [0, 1, 2, 0], sizes = [2, 8, 8, 4], strides = [1, 1, 1, 1]} : vector<2x10x10x4xf32> to vector<2x8x8x4xf32>
    %12 = vector.shape_cast %11 : vector<2x8x8x4xf32> to vector<128x4xf32>
    %13 = vector.extract_strided_slice %0 {offsets = [0, 2, 0, 0], sizes = [2, 8, 8, 4], strides = [1, 1, 1, 1]} : vector<2x10x10x4xf32> to vector<2x8x8x4xf32>
    %14 = vector.shape_cast %13 : vector<2x8x8x4xf32> to vector<128x4xf32>
    %15 = vector.extract_strided_slice %0 {offsets = [0, 2, 1, 0], sizes = [2, 8, 8, 4], strides = [1, 1, 1, 1]} : vector<2x10x10x4xf32> to vector<2x8x8x4xf32>
    %16 = vector.shape_cast %15 : vector<2x8x8x4xf32> to vector<128x4xf32>
    %17 = vector.extract_strided_slice %0 {offsets = [0, 2, 2, 0], sizes = [2, 8, 8, 4], strides = [1, 1, 1, 1]} : vector<2x10x10x4xf32> to vector<2x8x8x4xf32>
    %18 = vector.shape_cast %17 : vector<2x8x8x4xf32> to vector<128x4xf32>
    %19 = tpu.concatenate %2, %4, %6, %8, %10, %12, %14, %16, %18 in 1 : vector<128x4xf32>, vector<128x4xf32>, vector<128x4xf32>, vector<128x4xf32>, vector<128x4xf32>, vector<128x4xf32>, vector<128x4xf32>, vector<128x4xf32>, vector<128x4xf32> -> vector<128x36xf32>
    %20 = arith.truncf %19 : vector<128x36xf32> to vector<128x36xbf16>
    %c0_3 = arith.constant 0 : index
    %c0_4 = arith.constant 0 : index
    %21 = vector.load %arg1[%c0_3, %c0_4] : memref<36x8xbf16, #tpu.memory_space<vmem>>, vector<36x8xbf16>
    %cst = arith.constant dense<0.000000e+00> : vector<128x8xf32>
    %22 = tpu.matmul %20, %21, %cst {dimension_numbers = #tpu.dot_dimension_numbers<[1], [0], [0], [1], [0, 0, 1, 1], [], []>} : vector<128x36xbf16>, vector<36x8xbf16>, vector<128x8xf32> -> vector<128x8xf32>
    %c0_5 = arith.constant 0 : index
    %c0_6 = arith.constant 0 : index
    %23 = vector.load %arg5[%c0_5, %c0_6] : memref<1x8xf32, #tpu.memory_space<vmem>>, vector<1x8xf32>
    %c0_7 = arith.constant 0 : index
    %c0_8 = arith.constant 0 : index
    %24 = vector.load %arg6[%c0_7, %c0_8] : memref<1x8xf32, #tpu.memory_space<vmem>>, vector<1x8xf32>
    %cst_9 = arith.constant dense<0.000000e+00> : vector<8xf32>
    %25 = vector.multi_reduction <add>, %22, %cst_9 [0] : vector<128x8xf32> to vector<8xf32>
    %26 = vector.shape_cast %25 : vector<8xf32> to vector<1x8xf32>
    %cst_10 = arith.constant 7.812500e-03 : f32
    %27 = vector.broadcast %cst_10 : f32 to vector<1x8xf32>
    %28 = arith.mulf %26, %27 : vector<1x8xf32>
    %29 = arith.mulf %22, %22 : vector<128x8xf32>
    %cst_11 = arith.constant dense<0.000000e+00> : vector<8xf32>
    %30 = vector.multi_reduction <add>, %29, %cst_11 [0] : vector<128x8xf32> to vector<8xf32>
    %31 = vector.shape_cast %30 : vector<8xf32> to vector<1x8xf32>
    %cst_12 = arith.constant 7.812500e-03 : f32
    %32 = vector.broadcast %cst_12 : f32 to vector<1x8xf32>
    %33 = arith.mulf %31, %32 : vector<1x8xf32>
    %34 = arith.mulf %28, %28 : vector<1x8xf32>
    %35 = arith.subf %33, %34 : vector<1x8xf32>
    %cst_13 = arith.constant 0.000000e+00 : f32
    %36 = vector.broadcast %cst_13 : f32 to vector<1x8xf32>
    %37 = arith.maximumf %35, %36 : vector<1x8xf32>
    %38 = vector.broadcast %28 : vector<1x8xf32> to vector<128x8xf32>
    %39 = arith.subf %22, %38 : vector<128x8xf32>
    %cst_14 = arith.constant 9.99999974E-6 : f32
    %40 = vector.broadcast %cst_14 : f32 to vector<1x8xf32>
    %41 = arith.addf %37, %40 : vector<1x8xf32>
    %42 = math.rsqrt %41 : vector<1x8xf32>
    %43 = vector.broadcast %42 : vector<1x8xf32> to vector<128x8xf32>
    %44 = arith.mulf %39, %43 : vector<128x8xf32>
    %45 = vector.broadcast %23 : vector<1x8xf32> to vector<128x8xf32>
    %46 = arith.mulf %44, %45 : vector<128x8xf32>
    %47 = vector.broadcast %24 : vector<1x8xf32> to vector<128x8xf32>
    %48 = arith.addf %46, %47 : vector<128x8xf32>
    %cst_15 = arith.constant 0.000000e+00 : f32
    %49 = vector.broadcast %cst_15 : f32 to vector<128x8xf32>
    %50 = arith.maximumf %48, %49 : vector<128x8xf32>
    %cst_16 = arith.constant 0.000000e+00 : f32
    %51 = vector.broadcast %cst_16 : f32 to vector<2x10x10x8xf32>
    %c0_17 = arith.constant 0 : index
    %c0_18 = arith.constant 0 : index
    %c0_19 = arith.constant 0 : index
    %c0_20 = arith.constant 0 : index
    %52 = vector.load %arg10[%c0_17, %c0_18, %c0_19, %c0_20] : memref<2x10x10x8xf32, #tpu.memory_space<vmem>>, vector<2x10x10x8xf32>
    tpu.vector_store %arg10[%c0_17, %c0_18, %c0_19, %c0_20], %51 {strides = array<i32>} : memref<2x10x10x8xf32, #tpu.memory_space<vmem>>, vector<2x10x10x8xf32>,
    %53 = vector.shape_cast %50 : vector<128x8xf32> to vector<2x8x8x8xf32>
    %c0_21 = arith.constant 0 : index
    %c1 = arith.constant 1 : index
    %c1_22 = arith.constant 1 : index
    %c0_23 = arith.constant 0 : index
    %54 = vector.load %arg10[%c0_21, %c1, %c1_22, %c0_23] : memref<2x10x10x8xf32, #tpu.memory_space<vmem>>, vector<2x8x8x8xf32>
    tpu.vector_store %arg10[%c0_21, %c1, %c1_22, %c0_23], %53 {strides = array<i32>} : memref<2x10x10x8xf32, #tpu.memory_space<vmem>>, vector<2x8x8x8xf32>,
    %c0_24 = arith.constant 0 : index
    %c0_25 = arith.constant 0 : index
    %c0_26 = arith.constant 0 : index
    %c0_27 = arith.constant 0 : index
    %55 = vector.load %arg10[%c0_24, %c0_25, %c0_26, %c0_27] : memref<2x10x10x8xf32, #tpu.memory_space<vmem>>, vector<2x10x10x8xf32>
    %56 = vector.extract_strided_slice %55 {offsets = [0, 0, 0, 0], sizes = [2, 8, 8, 8], strides = [1, 1, 1, 1]} : vector<2x10x10x8xf32> to vector<2x8x8x8xf32>
    %57 = vector.shape_cast %56 : vector<2x8x8x8xf32> to vector<128x8xf32>
    %58 = vector.extract_strided_slice %55 {offsets = [0, 0, 1, 0], sizes = [2, 8, 8, 8], strides = [1, 1, 1, 1]} : vector<2x10x10x8xf32> to vector<2x8x8x8xf32>
    %59 = vector.shape_cast %58 : vector<2x8x8x8xf32> to vector<128x8xf32>
    %60 = vector.extract_strided_slice %55 {offsets = [0, 0, 2, 0], sizes = [2, 8, 8, 8], strides = [1, 1, 1, 1]} : vector<2x10x10x8xf32> to vector<2x8x8x8xf32>
    %61 = vector.shape_cast %60 : vector<2x8x8x8xf32> to vector<128x8xf32>
    %62 = vector.extract_strided_slice %55 {offsets = [0, 1, 0, 0], sizes = [2, 8, 8, 8], strides = [1, 1, 1, 1]} : vector<2x10x10x8xf32> to vector<2x8x8x8xf32>
    %63 = vector.shape_cast %62 : vector<2x8x8x8xf32> to vector<128x8xf32>
    %64 = vector.extract_strided_slice %55 {offsets = [0, 1, 1, 0], sizes = [2, 8, 8, 8], strides = [1, 1, 1, 1]} : vector<2x10x10x8xf32> to vector<2x8x8x8xf32>
    %65 = vector.shape_cast %64 : vector<2x8x8x8xf32> to vector<128x8xf32>
    %66 = vector.extract_strided_slice %55 {offsets = [0, 1, 2, 0], sizes = [2, 8, 8, 8], strides = [1, 1, 1, 1]} : vector<2x10x10x8xf32> to vector<2x8x8x8xf32>
    %67 = vector.shape_cast %66 : vector<2x8x8x8xf32> to vector<128x8xf32>
    %68 = vector.extract_strided_slice %55 {offsets = [0, 2, 0, 0], sizes = [2, 8, 8, 8], strides = [1, 1, 1, 1]} : vector<2x10x10x8xf32> to vector<2x8x8x8xf32>
    %69 = vector.shape_cast %68 : vector<2x8x8x8xf32> to vector<128x8xf32>
    %70 = vector.extract_strided_slice %55 {offsets = [0, 2, 1, 0], sizes = [2, 8, 8, 8], strides = [1, 1, 1, 1]} : vector<2x10x10x8xf32> to vector<2x8x8x8xf32>
    %71 = vector.shape_cast %70 : vector<2x8x8x8xf32> to vector<128x8xf32>
    %72 = vector.extract_strided_slice %55 {offsets = [0, 2, 2, 0], sizes = [2, 8, 8, 8], strides = [1, 1, 1, 1]} : vector<2x10x10x8xf32> to vector<2x8x8x8xf32>
    %73 = vector.shape_cast %72 : vector<2x8x8x8xf32> to vector<128x8xf32>
    %74 = tpu.concatenate %57, %59, %61, %63, %65, %67, %69, %71, %73 in 1 : vector<128x8xf32>, vector<128x8xf32>, vector<128x8xf32>, vector<128x8xf32>, vector<128x8xf32>, vector<128x8xf32>, vector<128x8xf32>, vector<128x8xf32>, vector<128x8xf32> -> vector<128x72xf32>
    %75 = arith.truncf %74 : vector<128x72xf32> to vector<128x72xbf16>
    %c0_28 = arith.constant 0 : index
    %c0_29 = arith.constant 0 : index
    %76 = vector.load %arg2[%c0_28, %c0_29] : memref<72x8xbf16, #tpu.memory_space<vmem>>, vector<72x8xbf16>
    %cst_30 = arith.constant dense<0.000000e+00> : vector<128x8xf32>
    %77 = tpu.matmul %75, %76, %cst_30 {dimension_numbers = #tpu.dot_dimension_numbers<[1], [0], [0], [1], [0, 0, 1, 1], [], []>} : vector<128x72xbf16>, vector<72x8xbf16>, vector<128x8xf32> -> vector<128x8xf32>
    %c0_31 = arith.constant 0 : index
    %c0_32 = arith.constant 0 : index
    %78 = vector.load %arg7[%c0_31, %c0_32] : memref<1x8xf32, #tpu.memory_space<vmem>>, vector<1x8xf32>
    %c0_33 = arith.constant 0 : index
    %c0_34 = arith.constant 0 : index
    %79 = vector.load %arg8[%c0_33, %c0_34] : memref<1x8xf32, #tpu.memory_space<vmem>>, vector<1x8xf32>
    %cst_35 = arith.constant dense<0.000000e+00> : vector<8xf32>
    %80 = vector.multi_reduction <add>, %77, %cst_35 [0] : vector<128x8xf32> to vector<8xf32>
    %81 = vector.shape_cast %80 : vector<8xf32> to vector<1x8xf32>
    %cst_36 = arith.constant 7.812500e-03 : f32
    %82 = vector.broadcast %cst_36 : f32 to vector<1x8xf32>
    %83 = arith.mulf %81, %82 : vector<1x8xf32>
    %84 = arith.mulf %77, %77 : vector<128x8xf32>
    %cst_37 = arith.constant dense<0.000000e+00> : vector<8xf32>
    %85 = vector.multi_reduction <add>, %84, %cst_37 [0] : vector<128x8xf32> to vector<8xf32>
    %86 = vector.shape_cast %85 : vector<8xf32> to vector<1x8xf32>
    %cst_38 = arith.constant 7.812500e-03 : f32
    %87 = vector.broadcast %cst_38 : f32 to vector<1x8xf32>
    %88 = arith.mulf %86, %87 : vector<1x8xf32>
    %89 = arith.mulf %83, %83 : vector<1x8xf32>
    %90 = arith.subf %88, %89 : vector<1x8xf32>
    %cst_39 = arith.constant 0.000000e+00 : f32
    %91 = vector.broadcast %cst_39 : f32 to vector<1x8xf32>
    %92 = arith.maximumf %90, %91 : vector<1x8xf32>
    %93 = vector.broadcast %83 : vector<1x8xf32> to vector<128x8xf32>
    %94 = arith.subf %77, %93 : vector<128x8xf32>
    %cst_40 = arith.constant 9.99999974E-6 : f32
    %95 = vector.broadcast %cst_40 : f32 to vector<1x8xf32>
    %96 = arith.addf %92, %95 : vector<1x8xf32>
    %97 = math.rsqrt %96 : vector<1x8xf32>
    %98 = vector.broadcast %97 : vector<1x8xf32> to vector<128x8xf32>
    %99 = arith.mulf %94, %98 : vector<128x8xf32>
    %100 = vector.broadcast %78 : vector<1x8xf32> to vector<128x8xf32>
    %101 = arith.mulf %99, %100 : vector<128x8xf32>
    %102 = vector.broadcast %79 : vector<1x8xf32> to vector<128x8xf32>
    %103 = arith.addf %101, %102 : vector<128x8xf32>
    %104 = vector.extract_strided_slice %0 {offsets = [0, 1, 1, 0], sizes = [2, 8, 8, 4], strides = [1, 1, 1, 1]} : vector<2x10x10x4xf32> to vector<2x8x8x4xf32>
    %105 = vector.shape_cast %104 : vector<2x8x8x4xf32> to vector<128x4xf32>
    %106 = arith.truncf %105 : vector<128x4xf32> to vector<128x4xbf16>
    %c0_41 = arith.constant 0 : index
    %c0_42 = arith.constant 0 : index
    %107 = vector.load %arg3[%c0_41, %c0_42] : memref<4x8xbf16, #tpu.memory_space<vmem>>, vector<4x8xbf16>
    %cst_43 = arith.constant dense<0.000000e+00> : vector<128x8xf32>
    %108 = tpu.matmul %106, %107, %cst_43 {dimension_numbers = #tpu.dot_dimension_numbers<[1], [0], [0], [1], [0, 0, 1, 1], [], []>} : vector<128x4xbf16>, vector<4x8xbf16>, vector<128x8xf32> -> vector<128x8xf32>
    %c0_44 = arith.constant 0 : index
    %c0_45 = arith.constant 0 : index
    %109 = vector.load %arg4[%c0_44, %c0_45] : memref<1x8xf32, #tpu.memory_space<vmem>>, vector<1x8xf32>
    %110 = vector.broadcast %109 : vector<1x8xf32> to vector<128x8xf32>
    %111 = arith.addf %108, %110 : vector<128x8xf32>
    %112 = arith.addf %103, %111 : vector<128x8xf32>
    %cst_46 = arith.constant 0.000000e+00 : f32
    %113 = vector.broadcast %cst_46 : f32 to vector<128x8xf32>
    %114 = arith.maximumf %112, %113 : vector<128x8xf32>
    %115 = vector.shape_cast %114 : vector<128x8xf32> to vector<2x8x8x8xf32>
    %c0_47 = arith.constant 0 : index
    %c0_48 = arith.constant 0 : index
    %c0_49 = arith.constant 0 : index
    %c0_50 = arith.constant 0 : index
    %116 = vector.load %arg9[%c0_47, %c0_48, %c0_49, %c0_50] : memref<2x8x8x8xf32, #tpu.memory_space<vmem>>, vector<2x8x8x8xf32>
    tpu.vector_store %arg9[%c0_47, %c0_48, %c0_49, %c0_50], %115 {strides = array<i32>} : memref<2x8x8x8xf32, #tpu.memory_space<vmem>>, vector<2x8x8x8xf32>,
    return
  }
}

</mosaic_0001>

<llo_original>
// kernel: tpu_custom_call.1
$region0: #{tpu_custom_call.1}
  #allocation0 [shape = 'u32[]', space=smem, size = 0x4, offset = 0x4, fixed_abs, tag = 'smem constant byte address 0x4 - core index']
  #allocation1 [shape = 'u32[144,128]{1,0:T(1,128)}', space=vmem, size = 0x12000, scoped, tag = 'internal scratch']
  #allocation2 [shape = 'f32[2,10,10,8]{3,2,1,0:T(8,128)}', space=vmem, size = 0x28000, scoped, tag = 'scratch operand']
  %s0 = inlined_call_operand.vmem [shape: f32[2,10,10,4], index: 0, kind: input, shape index: {}]
  %s1 = inlined_call_operand.vmem [shape: bf16[36,8], index: 1, kind: input, shape index: {}]
  %s2 = inlined_call_operand.vmem [shape: bf16[72,8], index: 2, kind: input, shape index: {}]
  %s3 = inlined_call_operand.vmem [shape: bf16[4,8], index: 3, kind: input, shape index: {}]
  %s4 = inlined_call_operand.vmem [shape: f32[1,8], index: 4, kind: input, shape index: {}]
  %s5 = inlined_call_operand.vmem [shape: f32[1,8], index: 5, kind: input, shape index: {}]
  %s6 = inlined_call_operand.vmem [shape: f32[1,8], index: 6, kind: input, shape index: {}]
  %s7 = inlined_call_operand.vmem [shape: f32[1,8], index: 7, kind: input, shape index: {}]
  %s8 = inlined_call_operand.vmem [shape: f32[1,8], index: 8, kind: input, shape index: {}]
  %s9 = inlined_call_operand.hbm [shape: f32[2,8,8,8], index: 9, kind: output, shape index: {}]
  %s10 = sld [smem:[#allocation0]]
  $region46: #{tpu_custom_call.1} parent=0
    _
  %s12 = ssub.s32 1, %s10
  %s13 = scalar_select 0, %s12, %s10
  $region1: #{tpu_custom_call.1} parent=0
    #allocation3 [shape = 'u8[65536]{0}', space=vmem, size = 0x10000, scoped, tag = 'output window, operand 0, single buffered']
    #allocation4 [shape = 's32[1]{0}', space=sflag, size = 0x4, scoped, tag = 'scoped memory for tpu_custom_call.1']
    %14 = vsyncpa [#allocation4], 0
    // Predicated region
    $region2: #{tpu_custom_call.1} parent=1 // pred_check
      _
    $region3: #{tpu_custom_call.1} parent=1 // pred_check_branch
      %16 = sbr.rel (0) target = $region5
    $region4: #{tpu_custom_call.1} parent=1 // pred_region
      _
    $region5: #{tpu_custom_call.1} parent=1 // pred_fallthru
      _
    // Predicated region
    $region6: #{tpu_custom_call.1} parent=1 // pred_check
      _
    $region7: #{tpu_custom_call.1} parent=1 // pred_check_branch
      %18 = sbr.rel (0) target = $region9
    $region8: #{tpu_custom_call.1} parent=1 // pred_region
      _
    $region9: #{tpu_custom_call.1} parent=1 // pred_fallthru
      _
    // Predicated region
    $region10: #{tpu_custom_call.1} parent=1 // pred_check
      _
    $region11: #{tpu_custom_call.1} parent=1 // pred_check_branch
      %20 = sbr.rel (0) target = $region13
    $region12: #{tpu_custom_call.1} parent=1 // pred_region
      _
    $region13: #{tpu_custom_call.1} parent=1 // pred_fallthru
      _
    // Predicated region
    $region14: #{tpu_custom_call.1} parent=1 // pred_check
      _
    $region15: #{tpu_custom_call.1} parent=1 // pred_check_branch
      %22 = sbr.rel (0) target = $region17
    $region16: #{tpu_custom_call.1} parent=1 // pred_region
      _
    $region17: #{tpu_custom_call.1} parent=1 // pred_fallthru
      _
    // Predicated region
    $region18: #{tpu_custom_call.1} parent=1 // pred_check
      _
    $region19: #{tpu_custom_call.1} parent=1 // pred_check_branch
      %24 = sbr.rel (0) target = $region21
    $region20: #{tpu_custom_call.1} parent=1 // pred_region
      _
    $region21: #{tpu_custom_call.1} parent=1 // pred_fallthru
      _
    // Predicated region
    $region22: #{tpu_custom_call.1} parent=1 // pred_check
      _
    $region23: #{tpu_custom_call.1} parent=1 // pred_check_branch
      %26 = sbr.rel (0) target = $region25
    $region24: #{tpu_custom_call.1} parent=1 // pred_region
      _
    $region25: #{tpu_custom_call.1} parent=1 // pred_fallthru
      _
    // Predicated region
    $region26: #{tpu_custom_call.1} parent=1 // pred_check
      _
    $region27: #{tpu_custom_call.1} parent=1 // pred_check_branch
      %28 = sbr.rel (0) target = $region29
    $region28: #{tpu_custom_call.1} parent=1 // pred_region
      _
    $region29: #{tpu_custom_call.1} parent=1 // pred_fallthru
      _
    // Predicated region
    $region30: #{tpu_custom_call.1} parent=1 // pred_check
      _
    $region31: #{tpu_custom_call.1} parent=1 // pred_check_branch
      %30 = sbr.rel (0) target = $region33
    $region32: #{tpu_custom_call.1} parent=1 // pred_region
      _
    $region33: #{tpu_custom_call.1} parent=1 // pred_fallthru
      _
    // Predicated region
    $region34: #{tpu_custom_call.1} parent=1 // pred_check
      _
    $region35: #{tpu_custom_call.1} parent=1 // pred_check_branch
      %32 = sbr.rel (0) target = $region37
    $region36: #{tpu_custom_call.1} parent=1 // pred_region
      _
    $region37: #{tpu_custom_call.1} parent=1 // pred_fallthru
      _
    %v34 = vld [vmem:[%s0] sm:$0xff]
    %v35 = vld [vmem:[%s0 + $0x8] sm:$0x3]
    %v36 = vld [vmem:[%s0 + $0x10] sm:$0xff]
    %v37 = vld [vmem:[%s0 + $0x18] sm:$0x3]
    %v38 = vld [vmem:[%s0 + $0x20] sm:$0xff]
    %v39 = vld [vmem:[%s0 + $0x28] sm:$0x3]
    %v40 = vld [vmem:[%s0 + $0x30] sm:$0xff]
    %v41 = vld [vmem:[%s0 + $0x38] sm:$0x3]
    %v42 = vld [vmem:[%s0 + $0x40] sm:$0xff]
    %v43 = vld [vmem:[%s0 + $0x48] sm:$0x3]
    %v44 = vld [vmem:[%s0 + $0x50] sm:$0xff]
    %v45 = vld [vmem:[%s0 + $0x58] sm:$0x3]
    %v46 = vld [vmem:[%s0 + $0x60] sm:$0xff]
    %v47 = vld [vmem:[%s0 + $0x68] sm:$0x3]
    %v48 = vld [vmem:[%s0 + $0x70] sm:$0xff]
    %v49 = vld [vmem:[%s0 + $0x78] sm:$0x3]
    %v50 = vld [vmem:[%s0 + $0x80] sm:$0xff]
    %v51 = vld [vmem:[%s0 + $0x88] sm:$0x3]
    %v52 = vld [vmem:[%s0 + $0x90] sm:$0xff]
    %v53 = vld [vmem:[%s0 + $0x98] sm:$0x3]
    %v54 = vld [vmem:[%s0 + $0xa0] sm:$0xff]
    %v55 = vld [vmem:[%s0 + $0xa8] sm:$0x3]
    %v56 = vld [vmem:[%s0 + $0xb0] sm:$0xff]
    %v57 = vld [vmem:[%s0 + $0xb8] sm:$0x3]
    %v58 = vld [vmem:[%s0 + $0xc0] sm:$0xff]
    %v59 = vld [vmem:[%s0 + $0xc8] sm:$0x3]
    %v60 = vld [vmem:[%s0 + $0xd0] sm:$0xff]
    %v61 = vld [vmem:[%s0 + $0xd8] sm:$0x3]
    %v62 = vld [vmem:[%s0 + $0xe0] sm:$0xff]
    %v63 = vld [vmem:[%s0 + $0xe8] sm:$0x3]
    %v64 = vld [vmem:[%s0 + $0xf0] sm:$0xff]
    %v65 = vld [vmem:[%s0 + $0xf8] sm:$0x3]
    %v66 = vld [vmem:[%s0 + $0x100] sm:$0xff]
    %v67 = vld [vmem:[%s0 + $0x108] sm:$0x3]
    %v68 = vld [vmem:[%s0 + $0x110] sm:$0xff]
    %v69 = vld [vmem:[%s0 + $0x118] sm:$0x3]
    %v70 = vld [vmem:[%s0 + $0x120] sm:$0xff]
    %v71 = vld [vmem:[%s0 + $0x128] sm:$0x3]
    %v72 = vld [vmem:[%s0 + $0x130] sm:$0xff]
    %v73 = vld [vmem:[%s0 + $0x138] sm:$0x3]
    %vm106 = vcmask 1046528
    %v107 = vrot.slane %v34, 1
    %v108 = vrot.slane %v35, 1
    %v109 = vsel %vm106, %v107, %v108
    %v110 = vrot.slane %v36, 1
    %v111 = vrot.slane %v37, 1
    %v112 = vsel %vm106, %v110, %v111
    %v113 = vrot.slane %v38, 1
    %v114 = vrot.slane %v39, 1
    %v115 = vsel %vm106, %v113, %v114
    %v116 = vrot.slane %v40, 1
    %v117 = vrot.slane %v41, 1
    %v118 = vsel %vm106, %v116, %v117
    %v119 = vrot.slane %v42, 1
    %v120 = vrot.slane %v43, 1
    %v121 = vsel %vm106, %v119, %v120
    %v122 = vrot.slane %v44, 1
    %v123 = vrot.slane %v45, 1
    %v124 = vsel %vm106, %v122, %v123
    %v125 = vrot.slane %v46, 1
    %v126 = vrot.slane %v47, 1
    %v127 = vsel %vm106, %v125, %v126
    %v128 = vrot.slane %v48, 1
    %v129 = vrot.slane %v49, 1
    %v130 = vsel %vm106, %v128, %v129
    %v131 = vrot.slane %v54, 1
    %v132 = vrot.slane %v55, 1
    %v133 = vsel %vm106, %v131, %v132
    %v134 = vrot.slane %v56, 1
    %v135 = vrot.slane %v57, 1
    %v136 = vsel %vm106, %v134, %v135
    %v137 = vrot.slane %v58, 1
    %v138 = vrot.slane %v59, 1
    %v139 = vsel %vm106, %v137, %v138
    %v140 = vrot.slane %v60, 1
    %v141 = vrot.slane %v61, 1
    %v142 = vsel %vm106, %v140, %v141
    %v143 = vrot.slane %v62, 1
    %v144 = vrot.slane %v63, 1
    %v145 = vsel %vm106, %v143, %v144
    %v146 = vrot.slane %v64, 1
    %v147 = vrot.slane %v65, 1
    %v148 = vsel %vm106, %v146, %v147
    %v149 = vrot.slane %v66, 1
    %v150 = vrot.slane %v67, 1
    %v151 = vsel %vm106, %v149, %v150
    %v152 = vrot.slane %v68, 1
    %v153 = vrot.slane %v69, 1
    %v154 = vsel %vm106, %v152, %v153
    %vm155 = vcmask 1045504
    %v156 = vrot.slane %v34, 2
    %v157 = vrot.slane %v35, 2
    %v158 = vsel %vm155, %v156, %v157
    %v159 = vrot.slane %v36, 2
    %v160 = vrot.slane %v37, 2
    %v161 = vsel %vm155, %v159, %v160
    %v162 = vrot.slane %v38, 2
    %v163 = vrot.slane %v39, 2
    %v164 = vsel %vm155, %v162, %v163
    %v165 = vrot.slane %v40, 2
    %v166 = vrot.slane %v41, 2
    %v167 = vsel %vm155, %v165, %v166
    %v168 = vrot.slane %v42, 2
    %v169 = vrot.slane %v43, 2
    %v170 = vsel %vm155, %v168, %v169
    %v171 = vrot.slane %v44, 2
    %v172 = vrot.slane %v45, 2
    %v173 = vsel %vm155, %v171, %v172
    %v174 = vrot.slane %v46, 2
    %v175 = vrot.slane %v47, 2
    %v176 = vsel %vm155, %v174, %v175
    %v177 = vrot.slane %v48, 2
    %v178 = vrot.slane %v49, 2
    %v179 = vsel %vm155, %v177, %v178
    %v180 = vrot.slane %v54, 2
    %v181 = vrot.slane %v55, 2
    %v182 = vsel %vm155, %v180, %v181
    %v183 = vrot.slane %v56, 2
    %v184 = vrot.slane %v57, 2
    %v185 = vsel %vm155, %v183, %v184
    %v186 = vrot.slane %v58, 2
    %v187 = vrot.slane %v59, 2
    %v188 = vsel %vm155, %v186, %v187
    %v189 = vrot.slane %v60, 2
    %v190 = vrot.slane %v61, 2
    %v191 = vsel %vm155, %v189, %v190
    %v192 = vrot.slane %v62, 2
    %v193 = vrot.slane %v63, 2
    %v194 = vsel %vm155, %v192, %v193
    %v195 = vrot.slane %v64, 2
    %v196 = vrot.slane %v65, 2
    %v197 = vsel %vm155, %v195, %v196
    %v198 = vrot.slane %v66, 2
    %v199 = vrot.slane %v67, 2
    %v200 = vsel %vm155, %v198, %v199
    %v201 = vrot.slane %v68, 2
    %v202 = vrot.slane %v69, 2
    %v203 = vsel %vm155, %v201, %v202
    %v208 = vrot.slane %v50, 1
    %v209 = vrot.slane %v51, 1
    %v210 = vsel %vm106, %v208, %v209
    %v211 = vrot.slane %v70, 1
    %v212 = vrot.slane %v71, 1
    %v213 = vsel %vm106, %v211, %v212
    %v230 = vrot.slane %v50, 2
    %v231 = vrot.slane %v51, 2
    %v232 = vsel %vm155, %v230, %v231
    %v233 = vrot.slane %v70, 2
    %v234 = vrot.slane %v71, 2
    %v235 = vsel %vm155, %v233, %v234
    %v240 = vrot.slane %v52, 1
    %v241 = vrot.slane %v53, 1
    %v242 = vsel %vm106, %v240, %v241
    %v243 = vrot.slane %v72, 1
    %v244 = vrot.slane %v73, 1
    %v245 = vsel %vm106, %v243, %v244
    %v246 = vrot.slane %v52, 2
    %v247 = vrot.slane %v53, 2
    %v248 = vsel %vm155, %v246, %v247
    %v249 = vrot.slane %v72, 2
    %v250 = vrot.slane %v73, 2
    %v251 = vsel %vm155, %v249, %v250
    %252 = vrot.lane.b32.xlu0 %v109, 4
    %v253 = vpop.permute.xlu0 %252
    %254 = vrot.lane.b32.xlu0 %v112, 4
    %v255 = vpop.permute.xlu0 %254
    %256 = vrot.lane.b32.xlu0 %v115, 4
    %v257 = vpop.permute.xlu0 %256
    %258 = vrot.lane.b32.xlu0 %v118, 4
    %v259 = vpop.permute.xlu0 %258
    %260 = vrot.lane.b32.xlu0 %v121, 4
    %v261 = vpop.permute.xlu0 %260
    %262 = vrot.lane.b32.xlu0 %v124, 4
    %v263 = vpop.permute.xlu0 %262
    %264 = vrot.lane.b32.xlu0 %v127, 4
    %v265 = vpop.permute.xlu0 %264
    %266 = vrot.lane.b32.xlu0 %v130, 4
    %v267 = vpop.permute.xlu0 %266
    %268 = vrot.lane.b32.xlu0 %v133, 4
    %v269 = vpop.permute.xlu0 %268
    %270 = vrot.lane.b32.xlu0 %v136, 4
    %v271 = vpop.permute.xlu0 %270
    %272 = vrot.lane.b32.xlu0 %v139, 4
    %v273 = vpop.permute.xlu0 %272
    %274 = vrot.lane.b32.xlu0 %v142, 4
    %v275 = vpop.permute.xlu0 %274
    %276 = vrot.lane.b32.xlu0 %v145, 4
    %v277 = vpop.permute.xlu0 %276
    %278 = vrot.lane.b32.xlu0 %v148, 4
    %v279 = vpop.permute.xlu0 %278
    %280 = vrot.lane.b32.xlu0 %v151, 4
    %v281 = vpop.permute.xlu0 %280
    %282 = vrot.lane.b32.xlu0 %v154, 4
    %v283 = vpop.permute.xlu0 %282
    %300 = vrot.lane.b32.xlu0 %v158, 8
    %v301 = vpop.permute.xlu0 %300
    %302 = vrot.lane.b32.xlu0 %v161, 8
    %v303 = vpop.permute.xlu0 %302
    %304 = vrot.lane.b32.xlu0 %v164, 8
    %v305 = vpop.permute.xlu0 %304
    %306 = vrot.lane.b32.xlu0 %v167, 8
    %v307 = vpop.permute.xlu0 %306
    %308 = vrot.lane.b32.xlu0 %v170, 8
    %v309 = vpop.permute.xlu0 %308
    %310 = vrot.lane.b32.xlu0 %v173, 8
    %v311 = vpop.permute.xlu0 %310
    %312 = vrot.lane.b32.xlu0 %v176, 8
    %v313 = vpop.permute.xlu0 %312
    %314 = vrot.lane.b32.xlu0 %v179, 8
    %v315 = vpop.permute.xlu0 %314
    %316 = vrot.lane.b32.xlu0 %v182, 8
    %v317 = vpop.permute.xlu0 %316
    %318 = vrot.lane.b32.xlu0 %v185, 8
    %v319 = vpop.permute.xlu0 %318
    %320 = vrot.lane.b32.xlu0 %v188, 8
    %v321 = vpop.permute.xlu0 %320
    %322 = vrot.lane.b32.xlu0 %v191, 8
    %v323 = vpop.permute.xlu0 %322
    %324 = vrot.lane.b32.xlu0 %v194, 8
    %v325 = vpop.permute.xlu0 %324
    %326 = vrot.lane.b32.xlu0 %v197, 8
    %v327 = vpop.permute.xlu0 %326
    %328 = vrot.lane.b32.xlu0 %v200, 8
    %v329 = vpop.permute.xlu0 %328
    %330 = vrot.lane.b32.xlu0 %v203, 8
    %v331 = vpop.permute.xlu0 %330
    %348 = vrot.lane.b32.xlu0 %v36, 12
    %v349 = vpop.permute.xlu0 %348
    %350 = vrot.lane.b32.xlu0 %v38, 12
    %v351 = vpop.permute.xlu0 %350
    %352 = vrot.lane.b32.xlu0 %v40, 12
    %v353 = vpop.permute.xlu0 %352
    %354 = vrot.lane.b32.xlu0 %v42, 12
    %v355 = vpop.permute.xlu0 %354
    %356 = vrot.lane.b32.xlu0 %v44, 12
    %v357 = vpop.permute.xlu0 %356
    %358 = vrot.lane.b32.xlu0 %v46, 12
    %v359 = vpop.permute.xlu0 %358
    %360 = vrot.lane.b32.xlu0 %v48, 12
    %v361 = vpop.permute.xlu0 %360
    %362 = vrot.lane.b32.xlu0 %v50, 12
    %v363 = vpop.permute.xlu0 %362
    %364 = vrot.lane.b32.xlu0 %v56, 12
    %v365 = vpop.permute.xlu0 %364
    %366 = vrot.lane.b32.xlu0 %v58, 12
    %v367 = vpop.permute.xlu0 %366
    %368 = vrot.lane.b32.xlu0 %v60, 12
    %v369 = vpop.permute.xlu0 %368
    %370 = vrot.lane.b32.xlu0 %v62, 12
    %v371 = vpop.permute.xlu0 %370
    %372 = vrot.lane.b32.xlu0 %v64, 12
    %v373 = vpop.permute.xlu0 %372
    %374 = vrot.lane.b32.xlu0 %v66, 12
    %v375 = vpop.permute.xlu0 %374
    %376 = vrot.lane.b32.xlu0 %v68, 12
    %v377 = vpop.permute.xlu0 %376
    %378 = vrot.lane.b32.xlu0 %v70, 12
    %v379 = vpop.permute.xlu0 %378
    %396 = vrot.lane.b32.xlu0 %v112, 16
    %v397 = vpop.permute.xlu0 %396
    %398 = vrot.lane.b32.xlu0 %v115, 16
    %v399 = vpop.permute.xlu0 %398
    %400 = vrot.lane.b32.xlu0 %v118, 16
    %v401 = vpop.permute.xlu0 %400
    %402 = vrot.lane.b32.xlu0 %v121, 16
    %v403 = vpop.permute.xlu0 %402
    %404 = vrot.lane.b32.xlu0 %v124, 16
    %v405 = vpop.permute.xlu0 %404
    %406 = vrot.lane.b32.xlu0 %v127, 16
    %v407 = vpop.permute.xlu0 %406
    %408 = vrot.lane.b32.xlu0 %v130, 16
    %v409 = vpop.permute.xlu0 %408
    %410 = vrot.lane.b32.xlu0 %v210, 16
    %v411 = vpop.permute.xlu0 %410
    %412 = vrot.lane.b32.xlu0 %v136, 16
    %v413 = vpop.permute.xlu0 %412
    %414 = vrot.lane.b32.xlu0 %v139, 16
    %v415 = vpop.permute.xlu0 %414
    %416 = vrot.lane.b32.xlu0 %v142, 16
    %v417 = vpop.permute.xlu0 %416
    %418 = vrot.lane.b32.xlu0 %v145, 16
    %v419 = vpop.permute.xlu0 %418
    %420 = vrot.lane.b32.xlu0 %v148, 16
    %v421 = vpop.permute.xlu0 %420
    %422 = vrot.lane.b32.xlu0 %v151, 16
    %v423 = vpop.permute.xlu0 %422
    %424 = vrot.lane.b32.xlu0 %v154, 16
    %v425 = vpop.permute.xlu0 %424
    %426 = vrot.lane.b32.xlu0 %v213, 16
    %v427 = vpop.permute.xlu0 %426
    %444 = vrot.lane.b32.xlu0 %v161, 20
    %v445 = vpop.permute.xlu0 %444
    %446 = vrot.lane.b32.xlu0 %v164, 20
    %v447 = vpop.permute.xlu0 %446
    %448 = vrot.lane.b32.xlu0 %v167, 20
    %v449 = vpop.permute.xlu0 %448
    %450 = vrot.lane.b32.xlu0 %v170, 20
    %v451 = vpop.permute.xlu0 %450
    %452 = vrot.lane.b32.xlu0 %v173, 20
    %v453 = vpop.permute.xlu0 %452
    %454 = vrot.lane.b32.xlu0 %v176, 20
    %v455 = vpop.permute.xlu0 %454
    %456 = vrot.lane.b32.xlu0 %v179, 20
    %v457 = vpop.permute.xlu0 %456
    %458 = vrot.lane.b32.xlu0 %v232, 20
    %v459 = vpop.permute.xlu0 %458
    %460 = vrot.lane.b32.xlu0 %v185, 20
    %v461 = vpop.permute.xlu0 %460
    %462 = vrot.lane.b32.xlu0 %v188, 20
    %v463 = vpop.permute.xlu0 %462
    %464 = vrot.lane.b32.xlu0 %v191, 20
    %v465 = vpop.permute.xlu0 %464
    %466 = vrot.lane.b32.xlu0 %v194, 20
    %v467 = vpop.permute.xlu0 %466
    %468 = vrot.lane.b32.xlu0 %v197, 20
    %v469 = vpop.permute.xlu0 %468
    %470 = vrot.lane.b32.xlu0 %v200, 20
    %v471 = vpop.permute.xlu0 %470
    %472 = vrot.lane.b32.xlu0 %v203, 20
    %v473 = vpop.permute.xlu0 %472
    %474 = vrot.lane.b32.xlu0 %v235, 20
    %v475 = vpop.permute.xlu0 %474
    %492 = vrot.lane.b32.xlu0 %v38, 24
    %v493 = vpop.permute.xlu0 %492
    %494 = vrot.lane.b32.xlu0 %v40, 24
    %v495 = vpop.permute.xlu0 %494
    %496 = vrot.lane.b32.xlu0 %v42, 24
    %v497 = vpop.permute.xlu0 %496
    %498 = vrot.lane.b32.xlu0 %v44, 24
    %v499 = vpop.permute.xlu0 %498
    %500 = vrot.lane.b32.xlu0 %v46, 24
    %v501 = vpop.permute.xlu0 %500
    %502 = vrot.lane.b32.xlu0 %v48, 24
    %v503 = vpop.permute.xlu0 %502
    %504 = vrot.lane.b32.xlu0 %v50, 24
    %v505 = vpop.permute.xlu0 %504
    %506 = vrot.lane.b32.xlu0 %v52, 24
    %v507 = vpop.permute.xlu0 %506
    %508 = vrot.lane.b32.xlu0 %v58, 24
    %v509 = vpop.permute.xlu0 %508
    %510 = vrot.lane.b32.xlu0 %v60, 24
    %v511 = vpop.permute.xlu0 %510
    %512 = vrot.lane.b32.xlu0 %v62, 24
    %v513 = vpop.permute.xlu0 %512
    %514 = vrot.lane.b32.xlu0 %v64, 24
    %v515 = vpop.permute.xlu0 %514
    %516 = vrot.lane.b32.xlu0 %v66, 24
    %v517 = vpop.permute.xlu0 %516
    %518 = vrot.lane.b32.xlu0 %v68, 24
    %v519 = vpop.permute.xlu0 %518
    %520 = vrot.lane.b32.xlu0 %v70, 24
    %v521 = vpop.permute.xlu0 %520
    %522 = vrot.lane.b32.xlu0 %v72, 24
    %v523 = vpop.permute.xlu0 %522
    %540 = vrot.lane.b32.xlu0 %v115, 28
    %v541 = vpop.permute.xlu0 %540
    %542 = vrot.lane.b32.xlu0 %v118, 28
    %v543 = vpop.permute.xlu0 %542
    %544 = vrot.lane.b32.xlu0 %v121, 28
    %v545 = vpop.permute.xlu0 %544
    %546 = vrot.lane.b32.xlu0 %v124, 28
    %v547 = vpop.permute.xlu0 %546
    %548 = vrot.lane.b32.xlu0 %v127, 28
    %v549 = vpop.permute.xlu0 %548
    %550 = vrot.lane.b32.xlu0 %v130, 28
    %v551 = vpop.permute.xlu0 %550
    %552 = vrot.lane.b32.xlu0 %v210, 28
    %v553 = vpop.permute.xlu0 %552
    %554 = vrot.lane.b32.xlu0 %v242, 28
    %v555 = vpop.permute.xlu0 %554
    %556 = vrot.lane.b32.xlu0 %v139, 28
    %v557 = vpop.permute.xlu0 %556
    %558 = vrot.lane.b32.xlu0 %v142, 28
    %v559 = vpop.permute.xlu0 %558
    %560 = vrot.lane.b32.xlu0 %v145, 28
    %v561 = vpop.permute.xlu0 %560
    %562 = vrot.lane.b32.xlu0 %v148, 28
    %v563 = vpop.permute.xlu0 %562
    %564 = vrot.lane.b32.xlu0 %v151, 28
    %v565 = vpop.permute.xlu0 %564
    %566 = vrot.lane.b32.xlu0 %v154, 28
    %v567 = vpop.permute.xlu0 %566
    %568 = vrot.lane.b32.xlu0 %v213, 28
    %v569 = vpop.permute.xlu0 %568
    %570 = vrot.lane.b32.xlu0 %v245, 28
    %v571 = vpop.permute.xlu0 %570
    %588 = vrot.lane.b32.xlu0 %v164, 32
    %v589 = vpop.permute.xlu0 %588
    %590 = vrot.lane.b32.xlu0 %v167, 32
    %v591 = vpop.permute.xlu0 %590
    %592 = vrot.lane.b32.xlu0 %v170, 32
    %v593 = vpop.permute.xlu0 %592
    %594 = vrot.lane.b32.xlu0 %v173, 32
    %v595 = vpop.permute.xlu0 %594
    %596 = vrot.lane.b32.xlu0 %v176, 32
    %v597 = vpop.permute.xlu0 %596
    %598 = vrot.lane.b32.xlu0 %v179, 32
    %v599 = vpop.permute.xlu0 %598
    %600 = vrot.lane.b32.xlu0 %v232, 32
    %v601 = vpop.permute.xlu0 %600
    %602 = vrot.lane.b32.xlu0 %v248, 32
    %v603 = vpop.permute.xlu0 %602
    %604 = vrot.lane.b32.xlu0 %v188, 32
    %v605 = vpop.permute.xlu0 %604
    %606 = vrot.lane.b32.xlu0 %v191, 32
    %v607 = vpop.permute.xlu0 %606
    %608 = vrot.lane.b32.xlu0 %v194, 32
    %v609 = vpop.permute.xlu0 %608
    %610 = vrot.lane.b32.xlu0 %v197, 32
    %v611 = vpop.permute.xlu0 %610
    %612 = vrot.lane.b32.xlu0 %v200, 32
    %v613 = vpop.permute.xlu0 %612
    %614 = vrot.lane.b32.xlu0 %v203, 32
    %v615 = vpop.permute.xlu0 %614
    %616 = vrot.lane.b32.xlu0 %v235, 32
    %v617 = vpop.permute.xlu0 %616
    %618 = vrot.lane.b32.xlu0 %v251, 32
    %v619 = vpop.permute.xlu0 %618
    %vm636 = vcmask 31744
    %v637 = vsel %vm636, %v34, %v253
    %v638 = vsel %vm636, %v36, %v255
    %v639 = vsel %vm636, %v38, %v257
    %v640 = vsel %vm636, %v40, %v259
    %v641 = vsel %vm636, %v42, %v261
    %v642 = vsel %vm636, %v44, %v263
    %v643 = vsel %vm636, %v46, %v265
    %v644 = vsel %vm636, %v48, %v267
    %v645 = vsel %vm636, %v54, %v269
    %v646 = vsel %vm636, %v56, %v271
    %v647 = vsel %vm636, %v58, %v273
    %v648 = vsel %vm636, %v60, %v275
    %v649 = vsel %vm636, %v62, %v277
    %v650 = vsel %vm636, %v64, %v279
    %v651 = vsel %vm636, %v66, %v281
    %v652 = vsel %vm636, %v68, %v283
    %vm653 = vcmask 64512
    %v654 = vsel %vm653, %v637, %v301
    %v655 = vsel %vm653, %v638, %v303
    %v656 = vsel %vm653, %v639, %v305
    %v657 = vsel %vm653, %v640, %v307
    %v658 = vsel %vm653, %v641, %v309
    %v659 = vsel %vm653, %v642, %v311
    %v660 = vsel %vm653, %v643, %v313
    %v661 = vsel %vm653, %v644, %v315
    %v662 = vsel %vm653, %v645, %v317
    %v663 = vsel %vm653, %v646, %v319
    %v664 = vsel %vm653, %v647, %v321
    %v665 = vsel %vm653, %v648, %v323
    %v666 = vsel %vm653, %v649, %v325
    %v667 = vsel %vm653, %v650, %v327
    %v668 = vsel %vm653, %v651, %v329
    %v669 = vsel %vm653, %v652, %v331
    %vm670 = vcmask 97280
    %v671 = vsel %vm670, %v654, %v349
    %v672 = vsel %vm670, %v655, %v351
    %v673 = vsel %vm670, %v656, %v353
    %v674 = vsel %vm670, %v657, %v355
    %v675 = vsel %vm670, %v658, %v357
    %v676 = vsel %vm670, %v659, %v359
    %v677 = vsel %vm670, %v660, %v361
    %v678 = vsel %vm670, %v661, %v363
    %v679 = vsel %vm670, %v662, %v365
    %v680 = vsel %vm670, %v663, %v367
    %v681 = vsel %vm670, %v664, %v369
    %v682 = vsel %vm670, %v665, %v371
    %v683 = vsel %vm670, %v666, %v373
    %v684 = vsel %vm670, %v667, %v375
    %v685 = vsel %vm670, %v668, %v377
    %v686 = vsel %vm670, %v669, %v379
    %vm687 = vcmask 130048
    %v688 = vsel %vm687, %v671, %v397
    %v689 = vsel %vm687, %v672, %v399
    %v690 = vsel %vm687, %v673, %v401
    %v691 = vsel %vm687, %v674, %v403
    %v692 = vsel %vm687, %v675, %v405
    %v693 = vsel %vm687, %v676, %v407
    %v694 = vsel %vm687, %v677, %v409
    %v695 = vsel %vm687, %v678, %v411
    %v696 = vsel %vm687, %v679, %v413
    %v697 = vsel %vm687, %v680, %v415
    %v698 = vsel %vm687, %v681, %v417
    %v699 = vsel %vm687, %v682, %v419
    %v700 = vsel %vm687, %v683, %v421
    %v701 = vsel %vm687, %v684, %v423
    %v702 = vsel %vm687, %v685, %v425
    %v703 = vsel %vm687, %v686, %v427
    %vm704 = vcmask 162816
    %v705 = vsel %vm704, %v688, %v445
    %v706 = vsel %vm704, %v689, %v447
    %v707 = vsel %vm704, %v690, %v449
    %v708 = vsel %vm704, %v691, %v451
    %v709 = vsel %vm704, %v692, %v453
    %v710 = vsel %vm704, %v693, %v455
    %v711 = vsel %vm704, %v694, %v457
    %v712 = vsel %vm704, %v695, %v459
    %v713 = vsel %vm704, %v696, %v461
    %v714 = vsel %vm704, %v697, %v463
    %v715 = vsel %vm704, %v698, %v465
    %v716 = vsel %vm704, %v699, %v467
    %v717 = vsel %vm704, %v700, %v469
    %v718 = vsel %vm704, %v701, %v471
    %v719 = vsel %vm704, %v702, %v473
    %v720 = vsel %vm704, %v703, %v475
    %vm721 = vcmask 195584
    %v722 = vsel %vm721, %v705, %v493
    %v723 = vsel %vm721, %v706, %v495
    %v724 = vsel %vm721, %v707, %v497
    %v725 = vsel %vm721, %v708, %v499
    %v726 = vsel %vm721, %v709, %v501
    %v727 = vsel %vm721, %v710, %v503
    %v728 = vsel %vm721, %v711, %v505
    %v729 = vsel %vm721, %v712, %v507
    %v730 = vsel %vm721, %v713, %v509
    %v731 = vsel %vm721, %v714, %v511
    %v732 = vsel %vm721, %v715, %v513
    %v733 = vsel %vm721, %v716, %v515
    %v734 = vsel %vm721, %v717, %v517
    %v735 = vsel %vm721, %v718, %v519
    %v736 = vsel %vm721, %v719, %v521
    %v737 = vsel %vm721, %v720, %v523
    %vm738 = vcmask 228352
    %v739 = vsel %vm738, %v722, %v541
    %v740 = vsel %vm738, %v723, %v543
    %v741 = vsel %vm738, %v724, %v545
    %v742 = vsel %vm738, %v725, %v547
    %v743 = vsel %vm738, %v726, %v549
    %v744 = vsel %vm738, %v727, %v551
    %v745 = vsel %vm738, %v728, %v553
    %v746 = vsel %vm738, %v729, %v555
    %v747 = vsel %vm738, %v730, %v557
    %v748 = vsel %vm738, %v731, %v559
    %v749 = vsel %vm738, %v732, %v561
    %v750 = vsel %vm738, %v733, %v563
    %v751 = vsel %vm738, %v734, %v565
    %v752 = vsel %vm738, %v735, %v567
    %v753 = vsel %vm738, %v736, %v569
    %v754 = vsel %vm738, %v737, %v571
    %vm755 = vcmask 261120
    %v756 = vsel %vm755, %v739, %v589
    %v757 = vsel %vm755, %v740, %v591
    %v758 = vsel %vm755, %v741, %v593
    %v759 = vsel %vm755, %v742, %v595
    %v760 = vsel %vm755, %v743, %v597
    %v761 = vsel %vm755, %v744, %v599
    %v762 = vsel %vm755, %v745, %v601
    %v763 = vsel %vm755, %v746, %v603
    %v764 = vsel %vm755, %v747, %v605
    %v765 = vsel %vm755, %v748, %v607
    %v766 = vsel %vm755, %v749, %v609
    %v767 = vsel %vm755, %v750, %v611
    %v768 = vsel %vm755, %v751, %v613
    %v769 = vsel %vm755, %v752, %v615
    %v770 = vsel %vm755, %v753, %v617
    %v771 = vsel %vm755, %v754, %v619
    %v772 = vpack.c.bf16 %v757, %v756
    %v773 = vpack.c.bf16 %v759, %v758
    %v774 = vpack.c.bf16 %v761, %v760
    %v775 = vpack.c.bf16 %v763, %v762
    %v776 = vpack.c.bf16 %v765, %v764
    %v777 = vpack.c.bf16 %v767, %v766
    %v778 = vpack.c.bf16 %v769, %v768
    %v779 = vpack.c.bf16 %v771, %v770
    %v780 = vld [vmem:[%s1] sm:$0xf]
    %v781 = vld [vmem:[%s1 + $0x4] sm:$0xf]
    %v782 = vld [vmem:[%s1 + $0x8] sm:$0xf]
    %v783 = vld [vmem:[%s1 + $0xc] sm:$0xf]
    %v784 = vld [vmem:[%s1 + $0x10] sm:$0x3]
    %v790 = vunpack.c.l.b16 %v780
    %v791 = vunpack.c.l.b16 %v781
    %v792 = vunpack.c.l.b16 %v782
    %v793 = vunpack.c.l.b16 %v783
    %v794 = vunpack.c.l.b16 %v784
    %v795 = vpack.c.b16 %v791, %v790
    %v796 = vpack.c.b16 %v793, %v792
    %v797 = vpack.c.b16 %v794, %v794
    %vm800 = vcmask 293888
    %v802 = vsel %vm800, %v772, 0
    %v805 = vsel %vm800, %v773, 0
    %v808 = vsel %vm800, %v774, 0
    %v811 = vsel %vm800, %v775, 0
    %v814 = vsel %vm800, %v776, 0
    %v817 = vsel %vm800, %v777, 0
    %v820 = vsel %vm800, %v778, 0
    %v823 = vsel %vm800, %v779, 0
    %vm825 = vcmask 1041408
    %v827 = vsel %vm825, %v797, 0
    %829 = vmatprep.subr.bf16.mxu0 0
    %830 = vmatpush1.bf16.msra.mxu0 0
    %831 = vmatprep.subr.bf16.mxu0 0
    %832 = vmatpush1.bf16.msra.mxu0 0
    %833 = vmatprep.subr.bf16.mxu0 0
    %834 = vmatpush1.bf16.msra.mxu0 0
    %835 = vmatprep.subr.bf16.mxu0 0
    %836 = vmatpush1.bf16.msra.mxu0 0
    %837 = vmatprep.subr.bf16.mxu0 0
    %838 = vmatpush1.bf16.msra.mxu0 0
    %839 = vmatprep.subr.bf16.mxu0 0
    %840 = vmatpush1.bf16.msra.mxu0 %v827
    %841 = vmatprep.subr.bf16.mxu0 0
    %842 = vmatpush1.bf16.msra.mxu0 %v796
    %843 = vmatprep.subr.bf16.mxu0 0
    %844 = vmatpush1.bf16.msra.mxu0 %v795
    %845 = vmatprep.subr.bf16.mxu0 0
    %846 = vmatpush2.bf16.msra.mxu0 0
    %847 = vmatprep.subr.bf16.mxu0 0
    %848 = vmatpush2.bf16.msra.mxu0 0
    %849 = vmatprep.subr.bf16.mxu0 0
    %850 = vmatpush2.bf16.msra.mxu0 0
    %851 = vmatprep.subr.bf16.mxu0 0
    %852 = vmatpush2.bf16.msra.mxu0 0
    %853 = vmatprep.subr.bf16.mxu0 0
    %854 = vmatpush2.bf16.msra.mxu0 0
    %855 = vmatprep.subr.bf16.mxu0 0
    %856 = vmatpush2.bf16.msra.mxu0 0
    %857 = vmatprep.subr.bf16.mxu0 0
    %858 = vmatpush2.bf16.msra.mxu0 0
    %859 = vmatprep.subr.bf16.mxu0 0
    %860 = vmatpush2.bf16.msra.mxu0 0
    %861 = vmatprep.mubr.bf16.mxu0 0
    %862 = vmatmul.mubr.bf16.gmra.mxu0 %v802
    %v863 = vpop.f32.mrf.mxu0
    %v864 = vadd.f32 0.0, %v863
    %v865 = vpop.f32.mrf.mxu0
    %v866 = vpop.f32.mrf.mxu0
    %v867 = vadd.f32 0.0, %v866
    %v868 = vpop.f32.mrf.mxu0
    %869 = vmatprep.mubr.bf16.mxu0 0
    %870 = vmatmul.mubr.bf16.gmra.mxu0 %v805
    %v871 = vpop.f32.mrf.mxu0
    %v872 = vadd.f32 0.0, %v871
    %v873 = vpop.f32.mrf.mxu0
    %v874 = vpop.f32.mrf.mxu0
    %v875 = vadd.f32 0.0, %v874
    %v876 = vpop.f32.mrf.mxu0
    %877 = vmatprep.mubr.bf16.mxu0 0
    %878 = vmatmul.mubr.bf16.gmra.mxu0 %v808
    %v879 = vpop.f32.mrf.mxu0
    %v880 = vadd.f32 0.0, %v879
    %v881 = vpop.f32.mrf.mxu0
    %v882 = vpop.f32.mrf.mxu0
    %v883 = vadd.f32 0.0, %v882
    %v884 = vpop.f32.mrf.mxu0
    %885 = vmatprep.mubr.bf16.mxu0 0
    %886 = vmatmul.mubr.bf16.gmra.mxu0 %v811
    %v887 = vpop.f32.mrf.mxu0
    %v888 = vadd.f32 0.0, %v887
    %v889 = vpop.f32.mrf.mxu0
    %v890 = vpop.f32.mrf.mxu0
    %v891 = vadd.f32 0.0, %v890
    %v892 = vpop.f32.mrf.mxu0
    %893 = vmatprep.mubr.bf16.mxu0 0
    %894 = vmatmul.mubr.bf16.gmra.mxu0 %v814
    %v895 = vpop.f32.mrf.mxu0
    %v896 = vadd.f32 0.0, %v895
    %v897 = vpop.f32.mrf.mxu0
    %v898 = vpop.f32.mrf.mxu0
    %v899 = vadd.f32 0.0, %v898
    %v900 = vpop.f32.mrf.mxu0
    %901 = vmatprep.mubr.bf16.mxu0 0
    %902 = vmatmul.mubr.bf16.gmra.mxu0 %v817
    %v903 = vpop.f32.mrf.mxu0
    %v904 = vadd.f32 0.0, %v903
    %v905 = vpop.f32.mrf.mxu0
    %v906 = vpop.f32.mrf.mxu0
    %v907 = vadd.f32 0.0, %v906
    %v908 = vpop.f32.mrf.mxu0
    %909 = vmatprep.mubr.bf16.mxu0 0
    %910 = vmatmul.mubr.bf16.gmra.mxu0 %v820
    %v911 = vpop.f32.mrf.mxu0
    %v912 = vadd.f32 0.0, %v911
    %v913 = vpop.f32.mrf.mxu0
    %v914 = vpop.f32.mrf.mxu0
    %v915 = vadd.f32 0.0, %v914
    %v916 = vpop.f32.mrf.mxu0
    %917 = vmatprep.mubr.bf16.mxu0 0
    %918 = vmatmul.mubr.bf16.gmra.mxu0 %v823
    %v919 = vpop.f32.mrf.mxu0
    %v920 = vadd.f32 0.0, %v919
    %v921 = vpop.f32.mrf.mxu0
    %v922 = vpop.f32.mrf.mxu0
    %v923 = vadd.f32 0.0, %v922
    %v924 = vpop.f32.mrf.mxu0
    %925 = vdwg.mxu0
    %v926 = vld [vmem:[%s5] sm:$0x1]
    %v927 = vld [vmem:[%s6] sm:$0x1]
    %v928 = vsel %vm653, %v864, 0.0
    %v929 = vsel %vm653, %v867, 0.0
    %v930 = vadd.f32 %v928, %v929
    %v931 = vsel %vm653, %v872, 0.0
    %v932 = vadd.f32 %v930, %v931
    %v933 = vsel %vm653, %v875, 0.0
    %v934 = vadd.f32 %v932, %v933
    %v935 = vsel %vm653, %v880, 0.0
    %v936 = vadd.f32 %v934, %v935
    %v937 = vsel %vm653, %v883, 0.0
    %v938 = vadd.f32 %v936, %v937
    %v939 = vsel %vm653, %v888, 0.0
    %v940 = vadd.f32 %v938, %v939
    %v941 = vsel %vm653, %v891, 0.0
    %v942 = vadd.f32 %v940, %v941
    %v943 = vsel %vm653, %v896, 0.0
    %v944 = vadd.f32 %v942, %v943
    %v945 = vsel %vm653, %v899, 0.0
    %v946 = vadd.f32 %v944, %v945
    %v947 = vsel %vm653, %v904, 0.0
    %v948 = vadd.f32 %v946, %v947
    %v949 = vsel %vm653, %v907, 0.0
    %v950 = vadd.f32 %v948, %v949
    %v951 = vsel %vm653, %v912, 0.0
    %v952 = vadd.f32 %v950, %v951
    %v953 = vsel %vm653, %v915, 0.0
    %v954 = vadd.f32 %v952, %v953
    %v955 = vsel %vm653, %v920, 0.0
    %v956 = vadd.f32 %v954, %v955
    %v957 = vsel %vm653, %v923, 0.0
    %v958 = vadd.f32 %v956, %v957
    %v959 = vrot.slane %v958, 4
    %v960 = vadd.f32 %v958, %v959
    %v961 = vrot.slane %v960, 2
    %v962 = vadd.f32 %v960, %v961
    %v963 = vrot.slane %v962, 1
    %v964 = vadd.f32 %v962, %v963
    %v965 = vmul.f32 %v964, 0.0078125
    %v966 = vmul.f32 %v864, %v864
    %v967 = vmul.f32 %v867, %v867
    %v968 = vmul.f32 %v872, %v872
    %v969 = vmul.f32 %v875, %v875
    %v970 = vmul.f32 %v880, %v880
    %v971 = vmul.f32 %v883, %v883
    %v972 = vmul.f32 %v888, %v888
    %v973 = vmul.f32 %v891, %v891
    %v974 = vmul.f32 %v896, %v896
    %v975 = vmul.f32 %v899, %v899
    %v976 = vmul.f32 %v904, %v904
    %v977 = vmul.f32 %v907, %v907
    %v978 = vmul.f32 %v912, %v912
    %v979 = vmul.f32 %v915, %v915
    %v980 = vmul.f32 %v920, %v920
    %v981 = vmul.f32 %v923, %v923
    %v982 = vsel %vm653, %v966, 0.0
    %v983 = vsel %vm653, %v967, 0.0
    %v984 = vadd.f32 %v982, %v983
    %v985 = vsel %vm653, %v968, 0.0
    %v986 = vadd.f32 %v984, %v985
    %v987 = vsel %vm653, %v969, 0.0
    %v988 = vadd.f32 %v986, %v987
    %v989 = vsel %vm653, %v970, 0.0
    %v990 = vadd.f32 %v988, %v989
    %v991 = vsel %vm653, %v971, 0.0
    %v992 = vadd.f32 %v990, %v991
    %v993 = vsel %vm653, %v972, 0.0
    %v994 = vadd.f32 %v992, %v993
    %v995 = vsel %vm653, %v973, 0.0
    %v996 = vadd.f32 %v994, %v995
    %v997 = vsel %vm653, %v974, 0.0
    %v998 = vadd.f32 %v996, %v997
    %v999 = vsel %vm653, %v975, 0.0
    %v1000 = vadd.f32 %v998, %v999
    %v1001 = vsel %vm653, %v976, 0.0
    %v1002 = vadd.f32 %v1000, %v1001
    %v1003 = vsel %vm653, %v977, 0.0
    %v1004 = vadd.f32 %v1002, %v1003
    %v1005 = vsel %vm653, %v978, 0.0
    %v1006 = vadd.f32 %v1004, %v1005
    %v1007 = vsel %vm653, %v979, 0.0
    %v1008 = vadd.f32 %v1006, %v1007
    %v1009 = vsel %vm653, %v980, 0.0
    %v1010 = vadd.f32 %v1008, %v1009
    %v1011 = vsel %vm653, %v981, 0.0
    %v1012 = vadd.f32 %v1010, %v1011
    %v1013 = vrot.slane %v1012, 4
    %v1014 = vadd.f32 %v1012, %v1013
    %v1015 = vrot.slane %v1014, 2
    %v1016 = vadd.f32 %v1014, %v1015
    %v1017 = vrot.slane %v1016, 1
    %v1018 = vadd.f32 %v1016, %v1017
    %v1019 = vmul.f32 %v1018, 0.0078125
    %v1020 = vmul.f32 %v965, %v965
    %v1021 = vsub.f32 %v1019, %v1020
    %v1022 = vmax.f32 %v1021, 0.0
    %v1023 = vsub.f32 %v864, %v965
    %v1024 = vsub.f32 %v867, %v965
    %v1025 = vsub.f32 %v872, %v965
    %v1026 = vsub.f32 %v875, %v965
    %v1027 = vsub.f32 %v880, %v965
    %v1028 = vsub.f32 %v883, %v965
    %v1029 = vsub.f32 %v888, %v965
    %v1030 = vsub.f32 %v891, %v965
    %v1031 = vsub.f32 %v896, %v965
    %v1032 = vsub.f32 %v899, %v965
    %v1033 = vsub.f32 %v904, %v965
    %v1034 = vsub.f32 %v907, %v965
    %v1035 = vsub.f32 %v912, %v965
    %v1036 = vsub.f32 %v915, %v965
    %v1037 = vsub.f32 %v920, %v965
    %v1038 = vsub.f32 %v923, %v965
    %v1039 = vadd.f32 %v1022, 1e-05
    %v1040 = vrsqrt.pop %v1039
    %v1041 = vmul.f32 %v1023, %v1040
    %v1042 = vmul.f32 %v1024, %v1040
    %v1043 = vmul.f32 %v1025, %v1040
    %v1044 = vmul.f32 %v1026, %v1040
    %v1045 = vmul.f32 %v1027, %v1040
    %v1046 = vmul.f32 %v1028, %v1040
    %v1047 = vmul.f32 %v1029, %v1040
    %v1048 = vmul.f32 %v1030, %v1040
    %v1049 = vmul.f32 %v1031, %v1040
    %v1050 = vmul.f32 %v1032, %v1040
    %v1051 = vmul.f32 %v1033, %v1040
    %v1052 = vmul.f32 %v1034, %v1040
    %v1053 = vmul.f32 %v1035, %v1040
    %v1054 = vmul.f32 %v1036, %v1040
    %v1055 = vmul.f32 %v1037, %v1040
    %v1056 = vmul.f32 %v1038, %v1040
    %v1058 = vlaneseq
    %v1059 = vshrl.u32 %v1058, 7
    %v1060 = vsub.s32 0, %v1059
    %v1061 = vrot.slane %v926, %v1060
    %v1063 = vmul.f32 %v1041, %v1061
    %v1064 = vmul.f32 %v1042, %v1061
    %v1065 = vmul.f32 %v1043, %v1061
    %v1066 = vmul.f32 %v1044, %v1061
    %v1067 = vmul.f32 %v1045, %v1061
    %v1068 = vmul.f32 %v1046, %v1061
    %v1069 = vmul.f32 %v1047, %v1061
    %v1070 = vmul.f32 %v1048, %v1061
    %v1071 = vmul.f32 %v1049, %v1061
    %v1072 = vmul.f32 %v1050, %v1061
    %v1073 = vmul.f32 %v1051, %v1061
    %v1074 = vmul.f32 %v1052, %v1061
    %v1075 = vmul.f32 %v1053, %v1061
    %v1076 = vmul.f32 %v1054, %v1061
    %v1077 = vmul.f32 %v1055, %v1061
    %v1078 = vmul.f32 %v1056, %v1061
    %v1080 = vlaneseq
    %v1081 = vshrl.u32 %v1080, 7
    %v1082 = vsub.s32 0, %v1081
    %v1083 = vrot.slane %v927, %v1082
    %v1085 = vadd.f32 %v1063, %v1083
    %v1086 = vadd.f32 %v1064, %v1083
    %v1087 = vadd.f32 %v1065, %v1083
    %v1088 = vadd.f32 %v1066, %v1083
    %v1089 = vadd.f32 %v1067, %v1083
    %v1090 = vadd.f32 %v1068, %v1083
    %v1091 = vadd.f32 %v1069, %v1083
    %v1092 = vadd.f32 %v1070, %v1083
    %v1093 = vadd.f32 %v1071, %v1083
    %v1094 = vadd.f32 %v1072, %v1083
    %v1095 = vadd.f32 %v1073, %v1083
    %v1096 = vadd.f32 %v1074, %v1083
    %v1097 = vadd.f32 %v1075, %v1083
    %v1098 = vadd.f32 %v1076, %v1083
    %v1099 = vadd.f32 %v1077, %v1083
    %v1100 = vadd.f32 %v1078, %v1083
    %v1101 = vmax.f32 %v1085, 0.0
    %v1102 = vmax.f32 %v1086, 0.0
    %v1103 = vmax.f32 %v1087, 0.0
    %v1104 = vmax.f32 %v1088, 0.0
    %v1105 = vmax.f32 %v1089, 0.0
    %v1106 = vmax.f32 %v1090, 0.0
    %v1107 = vmax.f32 %v1091, 0.0
    %v1108 = vmax.f32 %v1092, 0.0
    %v1109 = vmax.f32 %v1093, 0.0
    %v1110 = vmax.f32 %v1094, 0.0
    %v1111 = vmax.f32 %v1095, 0.0
    %v1112 = vmax.f32 %v1096, 0.0
    %v1113 = vmax.f32 %v1097, 0.0
    %v1114 = vmax.f32 %v1098, 0.0
    %v1115 = vmax.f32 %v1099, 0.0
    %v1116 = vmax.f32 %v1100, 0.0
    %1117 = vst.msk [vmem:[#allocation2] sm:$0xff] %vm653, 0.0
    %vm1118 = vcmask 58368
    %1119 = vst.msk [vmem:[#allocation2 + $0x8] sm:$0x3] %vm1118, 0.0
    %1120 = vst.msk [vmem:[#allocation2 + $0x10] sm:$0xff] %vm653, 0.0
    %1121 = vst.msk [vmem:[#allocation2 + $0x18] sm:$0x3] %vm1118, 0.0
    %1122 = vst.msk [vmem:[#allocation2 + $0x20] sm:$0xff] %vm653, 0.0
    %1123 = vst.msk [vmem:[#allocation2 + $0x28] sm:$0x3] %vm1118, 0.0
    %1124 = vst.msk [vmem:[#allocation2 + $0x30] sm:$0xff] %vm653, 0.0
    %1125 = vst.msk [vmem:[#allocation2 + $0x38] sm:$0x3] %vm1118, 0.0
    %1126 = vst.msk [vmem:[#allocation2 + $0x40] sm:$0xff] %vm653, 0.0
    %1127 = vst.msk [vmem:[#allocation2 + $0x48] sm:$0x3] %vm1118, 0.0
    %1128 = vst.msk [vmem:[#allocation2 + $0x50] sm:$0xff] %vm653, 0.0
    %1129 = vst.msk [vmem:[#allocation2 + $0x58] sm:$0x3] %vm1118, 0.0
    %1130 = vst.msk [vmem:[#allocation2 + $0x60] sm:$0xff] %vm653, 0.0
    %1131 = vst.msk [vmem:[#allocation2 + $0x68] sm:$0x3] %vm1118, 0.0
    %1132 = vst.msk [vmem:[#allocation2 + $0x70] sm:$0xff] %vm653, 0.0
    %1133 = vst.msk [vmem:[#allocation2 + $0x78] sm:$0x3] %vm1118, 0.0
    %1134 = vst.msk [vmem:[#allocation2 + $0x80] sm:$0xff] %vm653, 0.0
    %1135 = vst.msk [vmem:[#allocation2 + $0x88] sm:$0x3] %vm1118, 0.0
    %1136 = vst.msk [vmem:[#allocation2 + $0x90] sm:$0xff] %vm653, 0.0
    %1137 = vst.msk [vmem:[#allocation2 + $0x98] sm:$0x3] %vm1118, 0.0
    %1138 = vst.msk [vmem:[#allocation2 + $0xa0] sm:$0xff] %vm653, 0.0
    %1139 = vst.msk [vmem:[#allocation2 + $0xa8] sm:$0x3] %vm1118, 0.0
    %1140 = vst.msk [vmem:[#allocation2 + $0xb0] sm:$0xff] %vm653, 0.0
    %1141 = vst.msk [vmem:[#allocation2 + $0xb8] sm:$0x3] %vm1118, 0.0
    %1142 = vst.msk [vmem:[#allocation2 + $0xc0] sm:$0xff] %vm653, 0.0
    %1143 = vst.msk [vmem:[#allocation2 + $0xc8] sm:$0x3] %vm1118, 0.0
    %1144 = vst.msk [vmem:[#allocation2 + $0xd0] sm:$0xff] %vm653, 0.0
    %1145 = vst.msk [vmem:[#allocation2 + $0xd8] sm:$0x3] %vm1118, 0.0
    %1146 = vst.msk [vmem:[#allocation2 + $0xe0] sm:$0xff] %vm653, 0.0
    %1147 = vst.msk [vmem:[#allocation2 + $0xe8] sm:$0x3] %vm1118, 0.0
    %1148 = vst.msk [vmem:[#allocation2 + $0xf0] sm:$0xff] %vm653, 0.0
    %1149 = vst.msk [vmem:[#allocation2 + $0xf8] sm:$0x3] %vm1118, 0.0
    %1150 = vst.msk [vmem:[#allocation2 + $0x100] sm:$0xff] %vm653, 0.0
    %1151 = vst.msk [vmem:[#allocation2 + $0x108] sm:$0x3] %vm1118, 0.0
    %1152 = vst.msk [vmem:[#allocation2 + $0x110] sm:$0xff] %vm653, 0.0
    %1153 = vst.msk [vmem:[#allocation2 + $0x118] sm:$0x3] %vm1118, 0.0
    %1154 = vst.msk [vmem:[#allocation2 + $0x120] sm:$0xff] %vm653, 0.0
    %1155 = vst.msk [vmem:[#allocation2 + $0x128] sm:$0x3] %vm1118, 0.0
    %1156 = vst.msk [vmem:[#allocation2 + $0x130] sm:$0xff] %vm653, 0.0
    %1157 = vst.msk [vmem:[#allocation2 + $0x138] sm:$0x3] %vm1118, 0.0
    %s1158 = scalar_lea.vmem [#allocation2], 16
    %1159 = vst.msk [vmem:[%s1158 + $0x1] sm:$0xff] %vm653, %v1101
    %1160 = vst.msk [vmem:[%s1158 + $0x11] sm:$0xff] %vm653, %v1102
    %1161 = vst.msk [vmem:[%s1158 + $0x21] sm:$0xff] %vm653, %v1103
    %1162 = vst.msk [vmem:[%s1158 + $0x31] sm:$0xff] %vm653, %v1104
    %1163 = vst.msk [vmem:[%s1158 + $0x41] sm:$0xff] %vm653, %v1105
    %1164 = vst.msk [vmem:[%s1158 + $0x51] sm:$0xff] %vm653, %v1106
    %1165 = vst.msk [vmem:[%s1158 + $0x61] sm:$0xff] %vm653, %v1107
    %1166 = vst.msk [vmem:[%s1158 + $0x71] sm:$0xff] %vm653, %v1108
    %1167 = vst.msk [vmem:[%s1158 + $0xa1] sm:$0xff] %vm653, %v1109
    %1168 = vst.msk [vmem:[%s1158 + $0xb1] sm:$0xff] %vm653, %v1110
    %1169 = vst.msk [vmem:[%s1158 + $0xc1] sm:$0xff] %vm653, %v1111
    %1170 = vst.msk [vmem:[%s1158 + $0xd1] sm:$0xff] %vm653, %v1112
    %1171 = vst.msk [vmem:[%s1158 + $0xe1] sm:$0xff] %vm653, %v1113
    %1172 = vst.msk [vmem:[%s1158 + $0xf1] sm:$0xff] %vm653, %v1114
    %1173 = vst.msk [vmem:[%s1158 + $0x101] sm:$0xff] %vm653, %v1115
    %1174 = vst.msk [vmem:[%s1158 + $0x111] sm:$0xff] %vm653, %v1116
    %v1175 = vld [vmem:[#allocation2] sm:$0xff]
    %v1176 = vld [vmem:[#allocation2 + $0x8] sm:$0x3]
    %v1177 = vld [vmem:[#allocation2 + $0x10] sm:$0xff]
    %v1178 = vld [vmem:[#allocation2 + $0x18] sm:$0x3]
    %v1179 = vld [vmem:[#allocation2 + $0x20] sm:$0xff]
    %v1180 = vld [vmem:[#allocation2 + $0x28] sm:$0x3]
    %v1181 = vld [vmem:[#allocation2 + $0x30] sm:$0xff]
    %v1182 = vld [vmem:[#allocation2 + $0x38] sm:$0x3]
    %v1183 = vld [vmem:[#allocation2 + $0x40] sm:$0xff]
    %v1184 = vld [vmem:[#allocation2 + $0x48] sm:$0x3]
    %v1185 = vld [vmem:[#allocation2 + $0x50] sm:$0xff]
    %v1186 = vld [vmem:[#allocation2 + $0x58] sm:$0x3]
    %v1187 = vld [vmem:[#allocation2 + $0x60] sm:$0xff]
    %v1188 = vld [vmem:[#allocation2 + $0x68] sm:$0x3]
    %v1189 = vld [vmem:[#allocation2 + $0x70] sm:$0xff]
    %v1190 = vld [vmem:[#allocation2 + $0x78] sm:$0x3]
    %v1191 = vld [vmem:[#allocation2 + $0x80] sm:$0xff]
    %v1192 = vld [vmem:[#allocation2 + $0x88] sm:$0x3]
    %v1193 = vld [vmem:[#allocation2 + $0x90] sm:$0xff]
    %v1194 = vld [vmem:[#allocation2 + $0x98] sm:$0x3]
    %v1195 = vld [vmem:[#allocation2 + $0xa0] sm:$0xff]
    %v1196 = vld [vmem:[#allocation2 + $0xa8] sm:$0x3]
    %v1197 = vld [vmem:[#allocation2 + $0xb0] sm:$0xff]
    %v1198 = vld [vmem:[#allocation2 + $0xb8] sm:$0x3]
    %v1199 = vld [vmem:[#allocation2 + $0xc0] sm:$0xff]
    %v1200 = vld [vmem:[#allocation2 + $0xc8] sm:$0x3]
    %v1201 = vld [vmem:[#allocation2 + $0xd0] sm:$0xff]
    %v1202 = vld [vmem:[#allocation2 + $0xd8] sm:$0x3]
    %v1203 = vld [vmem:[#allocation2 + $0xe0] sm:$0xff]
    %v1204 = vld [vmem:[#allocation2 + $0xe8] sm:$0x3]
    %v1205 = vld [vmem:[#allocation2 + $0xf0] sm:$0xff]
    %v1206 = vld [vmem:[#allocation2 + $0xf8] sm:$0x3]
    %v1207 = vld [vmem:[#allocation2 + $0x100] sm:$0xff]
    %v1208 = vld [vmem:[#allocation2 + $0x108] sm:$0x3]
    %v1209 = vld [vmem:[#allocation2 + $0x110] sm:$0xff]
    %v1210 = vld [vmem:[#allocation2 + $0x118] sm:$0x3]
    %v1211 = vld [vmem:[#allocation2 + $0x120] sm:$0xff]
    %v1212 = vld [vmem:[#allocation2 + $0x128] sm:$0x3]
    %v1213 = vld [vmem:[#allocation2 + $0x130] sm:$0xff]
    %v1214 = vld [vmem:[#allocation2 + $0x138] sm:$0x3]
    %v1247 = vrot.slane %v1175, 1
    %v1248 = vrot.slane %v1176, 1
    %v1249 = vsel %vm106, %v1247, %v1248
    %v1250 = vrot.slane %v1177, 1
    %v1251 = vrot.slane %v1178, 1
    %v1252 = vsel %vm106, %v1250, %v1251
    %v1253 = vrot.slane %v1179, 1
    %v1254 = vrot.slane %v1180, 1
    %v1255 = vsel %vm106, %v1253, %v1254
    %v1256 = vrot.slane %v1181, 1
    %v1257 = vrot.slane %v1182, 1
    %v1258 = vsel %vm106, %v1256, %v1257
    %v1259 = vrot.slane %v1183, 1
    %v1260 = vrot.slane %v1184, 1
    %v1261 = vsel %vm106, %v1259, %v1260
    %v1262 = vrot.slane %v1185, 1
    %v1263 = vrot.slane %v1186, 1
    %v1264 = vsel %vm106, %v1262, %v1263
    %v1265 = vrot.slane %v1187, 1
    %v1266 = vrot.slane %v1188, 1
    %v1267 = vsel %vm106, %v1265, %v1266
    %v1268 = vrot.slane %v1189, 1
    %v1269 = vrot.slane %v1190, 1
    %v1270 = vsel %vm106, %v1268, %v1269
    %v1271 = vrot.slane %v1195, 1
    %v1272 = vrot.slane %v1196, 1
    %v1273 = vsel %vm106, %v1271, %v1272
    %v1274 = vrot.slane %v1197, 1
    %v1275 = vrot.slane %v1198, 1
    %v1276 = vsel %vm106, %v1274, %v1275
    %v1277 = vrot.slane %v1199, 1
    %v1278 = vrot.slane %v1200, 1
    %v1279 = vsel %vm106, %v1277, %v1278
    %v1280 = vrot.slane %v1201, 1
    %v1281 = vrot.slane %v1202, 1
    %v1282 = vsel %vm106, %v1280, %v1281
    %v1283 = vrot.slane %v1203, 1
    %v1284 = vrot.slane %v1204, 1
    %v1285 = vsel %vm106, %v1283, %v1284
    %v1286 = vrot.slane %v1205, 1
    %v1287 = vrot.slane %v1206, 1
    %v1288 = vsel %vm106, %v1286, %v1287
    %v1289 = vrot.slane %v1207, 1
    %v1290 = vrot.slane %v1208, 1
    %v1291 = vsel %vm106, %v1289, %v1290
    %v1292 = vrot.slane %v1209, 1
    %v1293 = vrot.slane %v1210, 1
    %v1294 = vsel %vm106, %v1292, %v1293
    %v1295 = vrot.slane %v1175, 2
    %v1296 = vrot.slane %v1176, 2
    %v1297 = vsel %vm155, %v1295, %v1296
    %v1298 = vrot.slane %v1177, 2
    %v1299 = vrot.slane %v1178, 2
    %v1300 = vsel %vm155, %v1298, %v1299
    %v1301 = vrot.slane %v1179, 2
    %v1302 = vrot.slane %v1180, 2
    %v1303 = vsel %vm155, %v1301, %v1302
    %v1304 = vrot.slane %v1181, 2
    %v1305 = vrot.slane %v1182, 2
    %v1306 = vsel %vm155, %v1304, %v1305
    %v1307 = vrot.slane %v1183, 2
    %v1308 = vrot.slane %v1184, 2
    %v1309 = vsel %vm155, %v1307, %v1308
    %v1310 = vrot.slane %v1185, 2
    %v1311 = vrot.slane %v1186, 2
    %v1312 = vsel %vm155, %v1310, %v1311
    %v1313 = vrot.slane %v1187, 2
    %v1314 = vrot.slane %v1188, 2
    %v1315 = vsel %vm155, %v1313, %v1314
    %v1316 = vrot.slane %v1189, 2
    %v1317 = vrot.slane %v1190, 2
    %v1318 = vsel %vm155, %v1316, %v1317
    %v1319 = vrot.slane %v1195, 2
    %v1320 = vrot.slane %v1196, 2
    %v1321 = vsel %vm155, %v1319, %v1320
    %v1322 = vrot.slane %v1197, 2
    %v1323 = vrot.slane %v1198, 2
    %v1324 = vsel %vm155, %v1322, %v1323
    %v1325 = vrot.slane %v1199, 2
    %v1326 = vrot.slane %v1200, 2
    %v1327 = vsel %vm155, %v1325, %v1326
    %v1328 = vrot.slane %v1201, 2
    %v1329 = vrot.slane %v1202, 2
    %v1330 = vsel %vm155, %v1328, %v1329
    %v1331 = vrot.slane %v1203, 2
    %v1332 = vrot.slane %v1204, 2
    %v1333 = vsel %vm155, %v1331, %v1332
    %v1334 = vrot.slane %v1205, 2
    %v1335 = vrot.slane %v1206, 2
    %v1336 = vsel %vm155, %v1334, %v1335
    %v1337 = vrot.slane %v1207, 2
    %v1338 = vrot.slane %v1208, 2
    %v1339 = vsel %vm155, %v1337, %v1338
    %v1340 = vrot.slane %v1209, 2
    %v1341 = vrot.slane %v1210, 2
    %v1342 = vsel %vm155, %v1340, %v1341
    %v1347 = vrot.slane %v1191, 1
    %v1348 = vrot.slane %v1192, 1
    %v1349 = vsel %vm106, %v1347, %v1348
    %v1350 = vrot.slane %v1211, 1
    %v1351 = vrot.slane %v1212, 1
    %v1352 = vsel %vm106, %v1350, %v1351
    %v1353 = vrot.slane %v1191, 2
    %v1354 = vrot.slane %v1192, 2
    %v1355 = vsel %vm155, %v1353, %v1354
    %v1356 = vrot.slane %v1211, 2
    %v1357 = vrot.slane %v1212, 2
    %v1358 = vsel %vm155, %v1356, %v1357
    %v1363 = vrot.slane %v1193, 1
    %v1364 = vrot.slane %v1194, 1
    %v1365 = vsel %vm106, %v1363, %v1364
    %v1366 = vrot.slane %v1213, 1
    %v1367 = vrot.slane %v1214, 1
    %v1368 = vsel %vm106, %v1366, %v1367
    %v1369 = vrot.slane %v1193, 2
    %v1370 = vrot.slane %v1194, 2
    %v1371 = vsel %vm155, %v1369, %v1370
    %v1372 = vrot.slane %v1213, 2
    %v1373 = vrot.slane %v1214, 2
    %v1374 = vsel %vm155, %v1372, %v1373
    %1375 = vrot.lane.b32.xlu0 %v1249, 8
    %v1376 = vpop.permute.xlu0 %1375
    %1377 = vrot.lane.b32.xlu0 %v1252, 8
    %v1378 = vpop.permute.xlu0 %1377
    %1379 = vrot.lane.b32.xlu0 %v1255, 8
    %v1380 = vpop.permute.xlu0 %1379
    %1381 = vrot.lane.b32.xlu0 %v1258, 8
    %v1382 = vpop.permute.xlu0 %1381
    %1383 = vrot.lane.b32.xlu0 %v1261, 8
    %v1384 = vpop.permute.xlu0 %1383
    %1385 = vrot.lane.b32.xlu0 %v1264, 8
    %v1386 = vpop.permute.xlu0 %1385
    %1387 = vrot.lane.b32.xlu0 %v1267, 8
    %v1388 = vpop.permute.xlu0 %1387
    %1389 = vrot.lane.b32.xlu0 %v1270, 8
    %v1390 = vpop.permute.xlu0 %1389
    %1391 = vrot.lane.b32.xlu0 %v1273, 8
    %v1392 = vpop.permute.xlu0 %1391
    %1393 = vrot.lane.b32.xlu0 %v1276, 8
    %v1394 = vpop.permute.xlu0 %1393
    %1395 = vrot.lane.b32.xlu0 %v1279, 8
    %v1396 = vpop.permute.xlu0 %1395
    %1397 = vrot.lane.b32.xlu0 %v1282, 8
    %v1398 = vpop.permute.xlu0 %1397
    %1399 = vrot.lane.b32.xlu0 %v1285, 8
    %v1400 = vpop.permute.xlu0 %1399
    %1401 = vrot.lane.b32.xlu0 %v1288, 8
    %v1402 = vpop.permute.xlu0 %1401
    %1403 = vrot.lane.b32.xlu0 %v1291, 8
    %v1404 = vpop.permute.xlu0 %1403
    %1405 = vrot.lane.b32.xlu0 %v1294, 8
    %v1406 = vpop.permute.xlu0 %1405
    %1423 = vrot.lane.b32.xlu0 %v1297, 16
    %v1424 = vpop.permute.xlu0 %1423
    %1425 = vrot.lane.b32.xlu0 %v1300, 16
    %v1426 = vpop.permute.xlu0 %1425
    %1427 = vrot.lane.b32.xlu0 %v1303, 16
    %v1428 = vpop.permute.xlu0 %1427
    %1429 = vrot.lane.b32.xlu0 %v1306, 16
    %v1430 = vpop.permute.xlu0 %1429
    %1431 = vrot.lane.b32.xlu0 %v1309, 16
    %v1432 = vpop.permute.xlu0 %1431
    %1433 = vrot.lane.b32.xlu0 %v1312, 16
    %v1434 = vpop.permute.xlu0 %1433
    %1435 = vrot.lane.b32.xlu0 %v1315, 16
    %v1436 = vpop.permute.xlu0 %1435
    %1437 = vrot.lane.b32.xlu0 %v1318, 16
    %v1438 = vpop.permute.xlu0 %1437
    %1439 = vrot.lane.b32.xlu0 %v1321, 16
    %v1440 = vpop.permute.xlu0 %1439
    %1441 = vrot.lane.b32.xlu0 %v1324, 16
    %v1442 = vpop.permute.xlu0 %1441
    %1443 = vrot.lane.b32.xlu0 %v1327, 16
    %v1444 = vpop.permute.xlu0 %1443
    %1445 = vrot.lane.b32.xlu0 %v1330, 16
    %v1446 = vpop.permute.xlu0 %1445
    %1447 = vrot.lane.b32.xlu0 %v1333, 16
    %v1448 = vpop.permute.xlu0 %1447
    %1449 = vrot.lane.b32.xlu0 %v1336, 16
    %v1450 = vpop.permute.xlu0 %1449
    %1451 = vrot.lane.b32.xlu0 %v1339, 16
    %v1452 = vpop.permute.xlu0 %1451
    %1453 = vrot.lane.b32.xlu0 %v1342, 16
    %v1454 = vpop.permute.xlu0 %1453
    %1471 = vrot.lane.b32.xlu0 %v1177, 24
    %v1472 = vpop.permute.xlu0 %1471
    %1473 = vrot.lane.b32.xlu0 %v1179, 24
    %v1474 = vpop.permute.xlu0 %1473
    %1475 = vrot.lane.b32.xlu0 %v1181, 24
    %v1476 = vpop.permute.xlu0 %1475
    %1477 = vrot.lane.b32.xlu0 %v1183, 24
    %v1478 = vpop.permute.xlu0 %1477
    %1479 = vrot.lane.b32.xlu0 %v1185, 24
    %v1480 = vpop.permute.xlu0 %1479
    %1481 = vrot.lane.b32.xlu0 %v1187, 24
    %v1482 = vpop.permute.xlu0 %1481
    %1483 = vrot.lane.b32.xlu0 %v1189, 24
    %v1484 = vpop.permute.xlu0 %1483
    %1485 = vrot.lane.b32.xlu0 %v1191, 24
    %v1486 = vpop.permute.xlu0 %1485
    %1487 = vrot.lane.b32.xlu0 %v1197, 24
    %v1488 = vpop.permute.xlu0 %1487
    %1489 = vrot.lane.b32.xlu0 %v1199, 24
    %v1490 = vpop.permute.xlu0 %1489
    %1491 = vrot.lane.b32.xlu0 %v1201, 24
    %v1492 = vpop.permute.xlu0 %1491
    %1493 = vrot.lane.b32.xlu0 %v1203, 24
    %v1494 = vpop.permute.xlu0 %1493
    %1495 = vrot.lane.b32.xlu0 %v1205, 24
    %v1496 = vpop.permute.xlu0 %1495
    %1497 = vrot.lane.b32.xlu0 %v1207, 24
    %v1498 = vpop.permute.xlu0 %1497
    %1499 = vrot.lane.b32.xlu0 %v1209, 24
    %v1500 = vpop.permute.xlu0 %1499
    %1501 = vrot.lane.b32.xlu0 %v1211, 24
    %v1502 = vpop.permute.xlu0 %1501
    %1519 = vrot.lane.b32.xlu0 %v1252, 32
    %v1520 = vpop.permute.xlu0 %1519
    %1521 = vrot.lane.b32.xlu0 %v1255, 32
    %v1522 = vpop.permute.xlu0 %1521
    %1523 = vrot.lane.b32.xlu0 %v1258, 32
    %v1524 = vpop.permute.xlu0 %1523
    %1525 = vrot.lane.b32.xlu0 %v1261, 32
    %v1526 = vpop.permute.xlu0 %1525
    %1527 = vrot.lane.b32.xlu0 %v1264, 32
    %v1528 = vpop.permute.xlu0 %1527
    %1529 = vrot.lane.b32.xlu0 %v1267, 32
    %v1530 = vpop.permute.xlu0 %1529
    %1531 = vrot.lane.b32.xlu0 %v1270, 32
    %v1532 = vpop.permute.xlu0 %1531
    %1533 = vrot.lane.b32.xlu0 %v1349, 32
    %v1534 = vpop.permute.xlu0 %1533
    %1535 = vrot.lane.b32.xlu0 %v1276, 32
    %v1536 = vpop.permute.xlu0 %1535
    %1537 = vrot.lane.b32.xlu0 %v1279, 32
    %v1538 = vpop.permute.xlu0 %1537
    %1539 = vrot.lane.b32.xlu0 %v1282, 32
    %v1540 = vpop.permute.xlu0 %1539
    %1541 = vrot.lane.b32.xlu0 %v1285, 32
    %v1542 = vpop.permute.xlu0 %1541
    %1543 = vrot.lane.b32.xlu0 %v1288, 32
    %v1544 = vpop.permute.xlu0 %1543
    %1545 = vrot.lane.b32.xlu0 %v1291, 32
    %v1546 = vpop.permute.xlu0 %1545
    %1547 = vrot.lane.b32.xlu0 %v1294, 32
    %v1548 = vpop.permute.xlu0 %1547
    %1549 = vrot.lane.b32.xlu0 %v1352, 32
    %v1550 = vpop.permute.xlu0 %1549
    %1567 = vrot.lane.b32.xlu0 %v1300, 40
    %v1568 = vpop.permute.xlu0 %1567
    %1569 = vrot.lane.b32.xlu0 %v1303, 40
    %v1570 = vpop.permute.xlu0 %1569
    %1571 = vrot.lane.b32.xlu0 %v1306, 40
    %v1572 = vpop.permute.xlu0 %1571
    %1573 = vrot.lane.b32.xlu0 %v1309, 40
    %v1574 = vpop.permute.xlu0 %1573
    %1575 = vrot.lane.b32.xlu0 %v1312, 40
    %v1576 = vpop.permute.xlu0 %1575
    %1577 = vrot.lane.b32.xlu0 %v1315, 40
    %v1578 = vpop.permute.xlu0 %1577
    %1579 = vrot.lane.b32.xlu0 %v1318, 40
    %v1580 = vpop.permute.xlu0 %1579
    %1581 = vrot.lane.b32.xlu0 %v1355, 40
    %v1582 = vpop.permute.xlu0 %1581
    %1583 = vrot.lane.b32.xlu0 %v1324, 40
    %v1584 = vpop.permute.xlu0 %1583
    %1585 = vrot.lane.b32.xlu0 %v1327, 40
    %v1586 = vpop.permute.xlu0 %1585
    %1587 = vrot.lane.b32.xlu0 %v1330, 40
    %v1588 = vpop.permute.xlu0 %1587
    %1589 = vrot.lane.b32.xlu0 %v1333, 40
    %v1590 = vpop.permute.xlu0 %1589
    %1591 = vrot.lane.b32.xlu0 %v1336, 40
    %v1592 = vpop.permute.xlu0 %1591
    %1593 = vrot.lane.b32.xlu0 %v1339, 40
    %v1594 = vpop.permute.xlu0 %1593
    %1595 = vrot.lane.b32.xlu0 %v1342, 40
    %v1596 = vpop.permute.xlu0 %1595
    %1597 = vrot.lane.b32.xlu0 %v1358, 40
    %v1598 = vpop.permute.xlu0 %1597
    %1615 = vrot.lane.b32.xlu0 %v1179, 48
    %v1616 = vpop.permute.xlu0 %1615
    %1617 = vrot.lane.b32.xlu0 %v1181, 48
    %v1618 = vpop.permute.xlu0 %1617
    %1619 = vrot.lane.b32.xlu0 %v1183, 48
    %v1620 = vpop.permute.xlu0 %1619
    %1621 = vrot.lane.b32.xlu0 %v1185, 48
    %v1622 = vpop.permute.xlu0 %1621
    %1623 = vrot.lane.b32.xlu0 %v1187, 48
    %v1624 = vpop.permute.xlu0 %1623
    %1625 = vrot.lane.b32.xlu0 %v1189, 48
    %v1626 = vpop.permute.xlu0 %1625
    %1627 = vrot.lane.b32.xlu0 %v1191, 48
    %v1628 = vpop.permute.xlu0 %1627
    %1629 = vrot.lane.b32.xlu0 %v1193, 48
    %v1630 = vpop.permute.xlu0 %1629
    %1631 = vrot.lane.b32.xlu0 %v1199, 48
    %v1632 = vpop.permute.xlu0 %1631
    %1633 = vrot.lane.b32.xlu0 %v1201, 48
    %v1634 = vpop.permute.xlu0 %1633
    %1635 = vrot.lane.b32.xlu0 %v1203, 48
    %v1636 = vpop.permute.xlu0 %1635
    %1637 = vrot.lane.b32.xlu0 %v1205, 48
    %v1638 = vpop.permute.xlu0 %1637
    %1639 = vrot.lane.b32.xlu0 %v1207, 48
    %v1640 = vpop.permute.xlu0 %1639
    %1641 = vrot.lane.b32.xlu0 %v1209, 48
    %v1642 = vpop.permute.xlu0 %1641
    %1643 = vrot.lane.b32.xlu0 %v1211, 48
    %v1644 = vpop.permute.xlu0 %1643
    %1645 = vrot.lane.b32.xlu0 %v1213, 48
    %v1646 = vpop.permute.xlu0 %1645
    %1663 = vrot.lane.b32.xlu0 %v1255, 56
    %v1664 = vpop.permute.xlu0 %1663
    %1665 = vrot.lane.b32.xlu0 %v1258, 56
    %v1666 = vpop.permute.xlu0 %1665
    %1667 = vrot.lane.b32.xlu0 %v1261, 56
    %v1668 = vpop.permute.xlu0 %1667
    %1669 = vrot.lane.b32.xlu0 %v1264, 56
    %v1670 = vpop.permute.xlu0 %1669
    %1671 = vrot.lane.b32.xlu0 %v1267, 56
    %v1672 = vpop.permute.xlu0 %1671
    %1673 = vrot.lane.b32.xlu0 %v1270, 56
    %v1674 = vpop.permute.xlu0 %1673
    %1675 = vrot.lane.b32.xlu0 %v1349, 56
    %v1676 = vpop.permute.xlu0 %1675
    %1677 = vrot.lane.b32.xlu0 %v1365, 56
    %v1678 = vpop.permute.xlu0 %1677
    %1679 = vrot.lane.b32.xlu0 %v1279, 56
    %v1680 = vpop.permute.xlu0 %1679
    %1681 = vrot.lane.b32.xlu0 %v1282, 56
    %v1682 = vpop.permute.xlu0 %1681
    %1683 = vrot.lane.b32.xlu0 %v1285, 56
    %v1684 = vpop.permute.xlu0 %1683
    %1685 = vrot.lane.b32.xlu0 %v1288, 56
    %v1686 = vpop.permute.xlu0 %1685
    %1687 = vrot.lane.b32.xlu0 %v1291, 56
    %v1688 = vpop.permute.xlu0 %1687
    %1689 = vrot.lane.b32.xlu0 %v1294, 56
    %v1690 = vpop.permute.xlu0 %1689
    %1691 = vrot.lane.b32.xlu0 %v1352, 56
    %v1692 = vpop.permute.xlu0 %1691
    %1693 = vrot.lane.b32.xlu0 %v1368, 56
    %v1694 = vpop.permute.xlu0 %1693
    %1711 = vrot.lane.b32.xlu0 %v1303, 64
    %v1712 = vpop.permute.xlu0 %1711
    %1713 = vrot.lane.b32.xlu0 %v1306, 64
    %v1714 = vpop.permute.xlu0 %1713
    %1715 = vrot.lane.b32.xlu0 %v1309, 64
    %v1716 = vpop.permute.xlu0 %1715
    %1717 = vrot.lane.b32.xlu0 %v1312, 64
    %v1718 = vpop.permute.xlu0 %1717
    %1719 = vrot.lane.b32.xlu0 %v1315, 64
    %v1720 = vpop.permute.xlu0 %1719
    %1721 = vrot.lane.b32.xlu0 %v1318, 64
    %v1722 = vpop.permute.xlu0 %1721
    %1723 = vrot.lane.b32.xlu0 %v1355, 64
    %v1724 = vpop.permute.xlu0 %1723
    %1725 = vrot.lane.b32.xlu0 %v1371, 64
    %v1726 = vpop.permute.xlu0 %1725
    %1727 = vrot.lane.b32.xlu0 %v1327, 64
    %v1728 = vpop.permute.xlu0 %1727
    %1729 = vrot.lane.b32.xlu0 %v1330, 64
    %v1730 = vpop.permute.xlu0 %1729
    %1731 = vrot.lane.b32.xlu0 %v1333, 64
    %v1732 = vpop.permute.xlu0 %1731
    %1733 = vrot.lane.b32.xlu0 %v1336, 64
    %v1734 = vpop.permute.xlu0 %1733
    %1735 = vrot.lane.b32.xlu0 %v1339, 64
    %v1736 = vpop.permute.xlu0 %1735
    %1737 = vrot.lane.b32.xlu0 %v1342, 64
    %v1738 = vpop.permute.xlu0 %1737
    %1739 = vrot.lane.b32.xlu0 %v1358, 64
    %v1740 = vpop.permute.xlu0 %1739
    %1741 = vrot.lane.b32.xlu0 %v1374, 64
    %v1742 = vpop.permute.xlu0 %1741
    %v1759 = vsel %vm653, %v1175, %v1376
    %v1760 = vsel %vm653, %v1177, %v1378
    %v1761 = vsel %vm653, %v1179, %v1380
    %v1762 = vsel %vm653, %v1181, %v1382
    %v1763 = vsel %vm653, %v1183, %v1384
    %v1764 = vsel %vm653, %v1185, %v1386
    %v1765 = vsel %vm653, %v1187, %v1388
    %v1766 = vsel %vm653, %v1189, %v1390
    %v1767 = vsel %vm653, %v1195, %v1392
    %v1768 = vsel %vm653, %v1197, %v1394
    %v1769 = vsel %vm653, %v1199, %v1396
    %v1770 = vsel %vm653, %v1201, %v1398
    %v1771 = vsel %vm653, %v1203, %v1400
    %v1772 = vsel %vm653, %v1205, %v1402
    %v1773 = vsel %vm653, %v1207, %v1404
    %v1774 = vsel %vm653, %v1209, %v1406
    %v1775 = vsel %vm687, %v1759, %v1424
    %v1776 = vsel %vm687, %v1760, %v1426
    %v1777 = vsel %vm687, %v1761, %v1428
    %v1778 = vsel %vm687, %v1762, %v1430
    %v1779 = vsel %vm687, %v1763, %v1432
    %v1780 = vsel %vm687, %v1764, %v1434
    %v1781 = vsel %vm687, %v1765, %v1436
    %v1782 = vsel %vm687, %v1766, %v1438
    %v1783 = vsel %vm687, %v1767, %v1440
    %v1784 = vsel %vm687, %v1768, %v1442
    %v1785 = vsel %vm687, %v1769, %v1444
    %v1786 = vsel %vm687, %v1770, %v1446
    %v1787 = vsel %vm687, %v1771, %v1448
    %v1788 = vsel %vm687, %v1772, %v1450
    %v1789 = vsel %vm687, %v1773, %v1452
    %v1790 = vsel %vm687, %v1774, %v1454
    %v1791 = vsel %vm721, %v1775, %v1472
    %v1792 = vsel %vm721, %v1776, %v1474
    %v1793 = vsel %vm721, %v1777, %v1476
    %v1794 = vsel %vm721, %v1778, %v1478
    %v1795 = vsel %vm721, %v1779, %v1480
    %v1796 = vsel %vm721, %v1780, %v1482
    %v1797 = vsel %vm721, %v1781, %v1484
    %v1798 = vsel %vm721, %v1782, %v1486
    %v1799 = vsel %vm721, %v1783, %v1488
    %v1800 = vsel %vm721, %v1784, %v1490
    %v1801 = vsel %vm721, %v1785, %v1492
    %v1802 = vsel %vm721, %v1786, %v1494
    %v1803 = vsel %vm721, %v1787, %v1496
    %v1804 = vsel %vm721, %v1788, %v1498
    %v1805 = vsel %vm721, %v1789, %v1500
    %v1806 = vsel %vm721, %v1790, %v1502
    %v1807 = vsel %vm755, %v1791, %v1520
    %v1808 = vsel %vm755, %v1792, %v1522
    %v1809 = vsel %vm755, %v1793, %v1524
    %v1810 = vsel %vm755, %v1794, %v1526
    %v1811 = vsel %vm755, %v1795, %v1528
    %v1812 = vsel %vm755, %v1796, %v1530
    %v1813 = vsel %vm755, %v1797, %v1532
    %v1814 = vsel %vm755, %v1798, %v1534
    %v1815 = vsel %vm755, %v1799, %v1536
    %v1816 = vsel %vm755, %v1800, %v1538
    %v1817 = vsel %vm755, %v1801, %v1540
    %v1818 = vsel %vm755, %v1802, %v1542
    %v1819 = vsel %vm755, %v1803, %v1544
    %v1820 = vsel %vm755, %v1804, %v1546
    %v1821 = vsel %vm755, %v1805, %v1548
    %v1822 = vsel %vm755, %v1806, %v1550
    %vm1823 = vcmask 326656
    %v1824 = vsel %vm1823, %v1807, %v1568
    %v1825 = vsel %vm1823, %v1808, %v1570
    %v1826 = vsel %vm1823, %v1809, %v1572
    %v1827 = vsel %vm1823, %v1810, %v1574
    %v1828 = vsel %vm1823, %v1811, %v1576
    %v1829 = vsel %vm1823, %v1812, %v1578
    %v1830 = vsel %vm1823, %v1813, %v1580
    %v1831 = vsel %vm1823, %v1814, %v1582
    %v1832 = vsel %vm1823, %v1815, %v1584
    %v1833 = vsel %vm1823, %v1816, %v1586
    %v1834 = vsel %vm1823, %v1817, %v1588
    %v1835 = vsel %vm1823, %v1818, %v1590
    %v1836 = vsel %vm1823, %v1819, %v1592
    %v1837 = vsel %vm1823, %v1820, %v1594
    %v1838 = vsel %vm1823, %v1821, %v1596
    %v1839 = vsel %vm1823, %v1822, %v1598
    %vm1840 = vcmask 392192
    %v1841 = vsel %vm1840, %v1824, %v1616
    %v1842 = vsel %vm1840, %v1825, %v1618
    %v1843 = vsel %vm1840, %v1826, %v1620
    %v1844 = vsel %vm1840, %v1827, %v1622
    %v1845 = vsel %vm1840, %v1828, %v1624
    %v1846 = vsel %vm1840, %v1829, %v1626
    %v1847 = vsel %vm1840, %v1830, %v1628
    %v1848 = vsel %vm1840, %v1831, %v1630
    %v1849 = vsel %vm1840, %v1832, %v1632
    %v1850 = vsel %vm1840, %v1833, %v1634
    %v1851 = vsel %vm1840, %v1834, %v1636
    %v1852 = vsel %vm1840, %v1835, %v1638
    %v1853 = vsel %vm1840, %v1836, %v1640
    %v1854 = vsel %vm1840, %v1837, %v1642
    %v1855 = vsel %vm1840, %v1838, %v1644
    %v1856 = vsel %vm1840, %v1839, %v1646
    %vm1857 = vcmask 457728
    %v1858 = vsel %vm1857, %v1841, %v1664
    %v1859 = vsel %vm1857, %v1842, %v1666
    %v1860 = vsel %vm1857, %v1843, %v1668
    %v1861 = vsel %vm1857, %v1844, %v1670
    %v1862 = vsel %vm1857, %v1845, %v1672
    %v1863 = vsel %vm1857, %v1846, %v1674
    %v1864 = vsel %vm1857, %v1847, %v1676
    %v1865 = vsel %vm1857, %v1848, %v1678
    %v1866 = vsel %vm1857, %v1849, %v1680
    %v1867 = vsel %vm1857, %v1850, %v1682
    %v1868 = vsel %vm1857, %v1851, %v1684
    %v1869 = vsel %vm1857, %v1852, %v1686
    %v1870 = vsel %vm1857, %v1853, %v1688
    %v1871 = vsel %vm1857, %v1854, %v1690
    %v1872 = vsel %vm1857, %v1855, %v1692
    %v1873 = vsel %vm1857, %v1856, %v1694
    %vm1874 = vcmask 523264
    %v1875 = vsel %vm1874, %v1858, %v1712
    %v1876 = vsel %vm1874, %v1859, %v1714
    %v1877 = vsel %vm1874, %v1860, %v1716
    %v1878 = vsel %vm1874, %v1861, %v1718
    %v1879 = vsel %vm1874, %v1862, %v1720
    %v1880 = vsel %vm1874, %v1863, %v1722
    %v1881 = vsel %vm1874, %v1864, %v1724
    %v1882 = vsel %vm1874, %v1865, %v1726
    %v1883 = vsel %vm1874, %v1866, %v1728
    %v1884 = vsel %vm1874, %v1867, %v1730
    %v1885 = vsel %vm1874, %v1868, %v1732
    %v1886 = vsel %vm1874, %v1869, %v1734
    %v1887 = vsel %vm1874, %v1870, %v1736
    %v1888 = vsel %vm1874, %v1871, %v1738
    %v1889 = vsel %vm1874, %v1872, %v1740
    %v1890 = vsel %vm1874, %v1873, %v1742
    %v1891 = vpack.c.bf16 %v1876, %v1875
    %v1892 = vpack.c.bf16 %v1878, %v1877
    %v1893 = vpack.c.bf16 %v1880, %v1879
    %v1894 = vpack.c.bf16 %v1882, %v1881
    %v1895 = vpack.c.bf16 %v1884, %v1883
    %v1896 = vpack.c.bf16 %v1886, %v1885
    %v1897 = vpack.c.bf16 %v1888, %v1887
    %v1898 = vpack.c.bf16 %v1890, %v1889
    %v1899 = vld [vmem:[%s2] sm:$0xf]
    %v1900 = vld [vmem:[%s2 + $0x4] sm:$0xf]
    %v1901 = vld [vmem:[%s2 + $0x8] sm:$0xf]
    %v1902 = vld [vmem:[%s2 + $0xc] sm:$0xf]
    %v1903 = vld [vmem:[%s2 + $0x10] sm:$0xf]
    %v1904 = vld [vmem:[%s2 + $0x14] sm:$0xf]
    %v1905 = vld [vmem:[%s2 + $0x18] sm:$0xf]
    %v1906 = vld [vmem:[%s2 + $0x1c] sm:$0xf]
    %v1907 = vld [vmem:[%s2 + $0x20] sm:$0xf]
    %v1917 = vunpack.c.l.b16 %v1899
    %v1918 = vunpack.c.l.b16 %v1900
    %v1919 = vunpack.c.l.b16 %v1901
    %v1920 = vunpack.c.l.b16 %v1902
    %v1921 = vunpack.c.l.b16 %v1903
    %v1922 = vunpack.c.l.b16 %v1904
    %v1923 = vunpack.c.l.b16 %v1905
    %v1924 = vunpack.c.l.b16 %v1906
    %v1925 = vunpack.c.l.b16 %v1907
    %v1926 = vpack.c.b16 %v1918, %v1917
    %v1927 = vpack.c.b16 %v1920, %v1919
    %v1928 = vpack.c.b16 %v1922, %v1921
    %v1929 = vpack.c.b16 %v1924, %v1923
    %v1930 = vpack.c.b16 %v1925, %v1925
    %vm1935 = vcmask 588800
    %v1937 = vsel %vm1935, %v1891, 0
    %v1940 = vsel %vm1935, %v1892, 0
    %v1943 = vsel %vm1935, %v1893, 0
    %v1946 = vsel %vm1935, %v1894, 0
    %v1949 = vsel %vm1935, %v1895, 0
    %v1952 = vsel %vm1935, %v1896, 0
    %v1955 = vsel %vm1935, %v1897, 0
    %v1958 = vsel %vm1935, %v1898, 0
    %vm1960 = vcmask 1043456
    %v1962 = vsel %vm1960, %v1930, 0
    %1964 = vmatprep.subr.bf16.mxu0 0
    %1965 = vmatpush1.bf16.msra.mxu0 0
    %1966 = vmatprep.subr.bf16.mxu0 0
    %1967 = vmatpush1.bf16.msra.mxu0 0
    %1968 = vmatprep.subr.bf16.mxu0 0
    %1969 = vmatpush1.bf16.msra.mxu0 0
    %1970 = vmatprep.subr.bf16.mxu0 0
    %1971 = vmatpush1.bf16.msra.mxu0 %v1962
    %1972 = vmatprep.subr.bf16.mxu0 0
    %1973 = vmatpush1.bf16.msra.mxu0 %v1929
    %1974 = vmatprep.subr.bf16.mxu0 0
    %1975 = vmatpush1.bf16.msra.mxu0 %v1928
    %1976 = vmatprep.subr.bf16.mxu0 0
    %1977 = vmatpush1.bf16.msra.mxu0 %v1927
    %1978 = vmatprep.subr.bf16.mxu0 0
    %1979 = vmatpush1.bf16.msra.mxu0 %v1926
    %1980 = vmatprep.subr.bf16.mxu0 0
    %1981 = vmatpush2.bf16.msra.mxu0 0
    %1982 = vmatprep.subr.bf16.mxu0 0
    %1983 = vmatpush2.bf16.msra.mxu0 0
    %1984 = vmatprep.subr.bf16.mxu0 0
    %1985 = vmatpush2.bf16.msra.mxu0 0
    %1986 = vmatprep.subr.bf16.mxu0 0
    %1987 = vmatpush2.bf16.msra.mxu0 0
    %1988 = vmatprep.subr.bf16.mxu0 0
    %1989 = vmatpush2.bf16.msra.mxu0 0
    %1990 = vmatprep.subr.bf16.mxu0 0
    %1991 = vmatpush2.bf16.msra.mxu0 0
    %1992 = vmatprep.subr.bf16.mxu0 0
    %1993 = vmatpush2.bf16.msra.mxu0 0
    %1994 = vmatprep.subr.bf16.mxu0 0
    %1995 = vmatpush2.bf16.msra.mxu0 0
    %1996 = vmatprep.mubr.bf16.mxu0 0
    %1997 = vmatmul.mubr.bf16.gmra.mxu0 %v1937
    %v1998 = vpop.f32.mrf.mxu0
    %v1999 = vadd.f32 0.0, %v1998
    %v2000 = vpop.f32.mrf.mxu0
    %v2001 = vpop.f32.mrf.mxu0
    %v2002 = vadd.f32 0.0, %v2001
    %v2003 = vpop.f32.mrf.mxu0
    %2004 = vmatprep.mubr.bf16.mxu0 0
    %2005 = vmatmul.mubr.bf16.gmra.mxu0 %v1940
    %v2006 = vpop.f32.mrf.mxu0
    %v2007 = vadd.f32 0.0, %v2006
    %v2008 = vpop.f32.mrf.mxu0
    %v2009 = vpop.f32.mrf.mxu0
    %v2010 = vadd.f32 0.0, %v2009
    %v2011 = vpop.f32.mrf.mxu0
    %2012 = vmatprep.mubr.bf16.mxu0 0
    %2013 = vmatmul.mubr.bf16.gmra.mxu0 %v1943
    %v2014 = vpop.f32.mrf.mxu0
    %v2015 = vadd.f32 0.0, %v2014
    %v2016 = vpop.f32.mrf.mxu0
    %v2017 = vpop.f32.mrf.mxu0
    %v2018 = vadd.f32 0.0, %v2017
    %v2019 = vpop.f32.mrf.mxu0
    %2020 = vmatprep.mubr.bf16.mxu0 0
    %2021 = vmatmul.mubr.bf16.gmra.mxu0 %v1946
    %v2022 = vpop.f32.mrf.mxu0
    %v2023 = vadd.f32 0.0, %v2022
    %v2024 = vpop.f32.mrf.mxu0
    %v2025 = vpop.f32.mrf.mxu0
    %v2026 = vadd.f32 0.0, %v2025
    %v2027 = vpop.f32.mrf.mxu0
    %2028 = vmatprep.mubr.bf16.mxu0 0
    %2029 = vmatmul.mubr.bf16.gmra.mxu0 %v1949
    %v2030 = vpop.f32.mrf.mxu0
    %v2031 = vadd.f32 0.0, %v2030
    %v2032 = vpop.f32.mrf.mxu0
    %v2033 = vpop.f32.mrf.mxu0
    %v2034 = vadd.f32 0.0, %v2033
    %v2035 = vpop.f32.mrf.mxu0
    %2036 = vmatprep.mubr.bf16.mxu0 0
    %2037 = vmatmul.mubr.bf16.gmra.mxu0 %v1952
    %v2038 = vpop.f32.mrf.mxu0
    %v2039 = vadd.f32 0.0, %v2038
    %v2040 = vpop.f32.mrf.mxu0
    %v2041 = vpop.f32.mrf.mxu0
    %v2042 = vadd.f32 0.0, %v2041
    %v2043 = vpop.f32.mrf.mxu0
    %2044 = vmatprep.mubr.bf16.mxu0 0
    %2045 = vmatmul.mubr.bf16.gmra.mxu0 %v1955
    %v2046 = vpop.f32.mrf.mxu0
    %v2047 = vadd.f32 0.0, %v2046
    %v2048 = vpop.f32.mrf.mxu0
    %v2049 = vpop.f32.mrf.mxu0
    %v2050 = vadd.f32 0.0, %v2049
    %v2051 = vpop.f32.mrf.mxu0
    %2052 = vmatprep.mubr.bf16.mxu0 0
    %2053 = vmatmul.mubr.bf16.gmra.mxu0 %v1958
    %v2054 = vpop.f32.mrf.mxu0
    %v2055 = vadd.f32 0.0, %v2054
    %v2056 = vpop.f32.mrf.mxu0
    %v2057 = vpop.f32.mrf.mxu0
    %v2058 = vadd.f32 0.0, %v2057
    %v2059 = vpop.f32.mrf.mxu0
    %2060 = vdwg.mxu0
    %v2061 = vld [vmem:[%s7] sm:$0x1]
    %v2062 = vld [vmem:[%s8] sm:$0x1]
    %v2063 = vsel %vm653, %v1999, 0.0
    %v2064 = vsel %vm653, %v2002, 0.0
    %v2065 = vadd.f32 %v2063, %v2064
    %v2066 = vsel %vm653, %v2007, 0.0
    %v2067 = vadd.f32 %v2065, %v2066
    %v2068 = vsel %vm653, %v2010, 0.0
    %v2069 = vadd.f32 %v2067, %v2068
    %v2070 = vsel %vm653, %v2015, 0.0
    %v2071 = vadd.f32 %v2069, %v2070
    %v2072 = vsel %vm653, %v2018, 0.0
    %v2073 = vadd.f32 %v2071, %v2072
    %v2074 = vsel %vm653, %v2023, 0.0
    %v2075 = vadd.f32 %v2073, %v2074
    %v2076 = vsel %vm653, %v2026, 0.0
    %v2077 = vadd.f32 %v2075, %v2076
    %v2078 = vsel %vm653, %v2031, 0.0
    %v2079 = vadd.f32 %v2077, %v2078
    %v2080 = vsel %vm653, %v2034, 0.0
    %v2081 = vadd.f32 %v2079, %v2080
    %v2082 = vsel %vm653, %v2039, 0.0
    %v2083 = vadd.f32 %v2081, %v2082
    %v2084 = vsel %vm653, %v2042, 0.0
    %v2085 = vadd.f32 %v2083, %v2084
    %v2086 = vsel %vm653, %v2047, 0.0
    %v2087 = vadd.f32 %v2085, %v2086
    %v2088 = vsel %vm653, %v2050, 0.0
    %v2089 = vadd.f32 %v2087, %v2088
    %v2090 = vsel %vm653, %v2055, 0.0
    %v2091 = vadd.f32 %v2089, %v2090
    %v2092 = vsel %vm653, %v2058, 0.0
    %v2093 = vadd.f32 %v2091, %v2092
    %v2094 = vrot.slane %v2093, 4
    %v2095 = vadd.f32 %v2093, %v2094
    %v2096 = vrot.slane %v2095, 2
    %v2097 = vadd.f32 %v2095, %v2096
    %v2098 = vrot.slane %v2097, 1
    %v2099 = vadd.f32 %v2097, %v2098
    %v2100 = vmul.f32 %v2099, 0.0078125
    %v2101 = vmul.f32 %v1999, %v1999
    %v2102 = vmul.f32 %v2002, %v2002
    %v2103 = vmul.f32 %v2007, %v2007
    %v2104 = vmul.f32 %v2010, %v2010
    %v2105 = vmul.f32 %v2015, %v2015
    %v2106 = vmul.f32 %v2018, %v2018
    %v2107 = vmul.f32 %v2023, %v2023
    %v2108 = vmul.f32 %v2026, %v2026
    %v2109 = vmul.f32 %v2031, %v2031
    %v2110 = vmul.f32 %v2034, %v2034
    %v2111 = vmul.f32 %v2039, %v2039
    %v2112 = vmul.f32 %v2042, %v2042
    %v2113 = vmul.f32 %v2047, %v2047
    %v2114 = vmul.f32 %v2050, %v2050
    %v2115 = vmul.f32 %v2055, %v2055
    %v2116 = vmul.f32 %v2058, %v2058
    %v2117 = vsel %vm653, %v2101, 0.0
    %v2118 = vsel %vm653, %v2102, 0.0
    %v2119 = vadd.f32 %v2117, %v2118
    %v2120 = vsel %vm653, %v2103, 0.0
    %v2121 = vadd.f32 %v2119, %v2120
    %v2122 = vsel %vm653, %v2104, 0.0
    %v2123 = vadd.f32 %v2121, %v2122
    %v2124 = vsel %vm653, %v2105, 0.0
    %v2125 = vadd.f32 %v2123, %v2124
    %v2126 = vsel %vm653, %v2106, 0.0
    %v2127 = vadd.f32 %v2125, %v2126
    %v2128 = vsel %vm653, %v2107, 0.0
    %v2129 = vadd.f32 %v2127, %v2128
    %v2130 = vsel %vm653, %v2108, 0.0
    %v2131 = vadd.f32 %v2129, %v2130
    %v2132 = vsel %vm653, %v2109, 0.0
    %v2133 = vadd.f32 %v2131, %v2132
    %v2134 = vsel %vm653, %v2110, 0.0
    %v2135 = vadd.f32 %v2133, %v2134
    %v2136 = vsel %vm653, %v2111, 0.0
    %v2137 = vadd.f32 %v2135, %v2136
    %v2138 = vsel %vm653, %v2112, 0.0
    %v2139 = vadd.f32 %v2137, %v2138
    %v2140 = vsel %vm653, %v2113, 0.0
    %v2141 = vadd.f32 %v2139, %v2140
    %v2142 = vsel %vm653, %v2114, 0.0
    %v2143 = vadd.f32 %v2141, %v2142
    %v2144 = vsel %vm653, %v2115, 0.0
    %v2145 = vadd.f32 %v2143, %v2144
    %v2146 = vsel %vm653, %v2116, 0.0
    %v2147 = vadd.f32 %v2145, %v2146
    %v2148 = vrot.slane %v2147, 4
    %v2149 = vadd.f32 %v2147, %v2148
    %v2150 = vrot.slane %v2149, 2
    %v2151 = vadd.f32 %v2149, %v2150
    %v2152 = vrot.slane %v2151, 1
    %v2153 = vadd.f32 %v2151, %v2152
    %v2154 = vmul.f32 %v2153, 0.0078125
    %v2155 = vmul.f32 %v2100, %v2100
    %v2156 = vsub.f32 %v2154, %v2155
    %v2157 = vmax.f32 %v2156, 0.0
    %v2158 = vsub.f32 %v1999, %v2100
    %v2159 = vsub.f32 %v2002, %v2100
    %v2160 = vsub.f32 %v2007, %v2100
    %v2161 = vsub.f32 %v2010, %v2100
    %v2162 = vsub.f32 %v2015, %v2100
    %v2163 = vsub.f32 %v2018, %v2100
    %v2164 = vsub.f32 %v2023, %v2100
    %v2165 = vsub.f32 %v2026, %v2100
    %v2166 = vsub.f32 %v2031, %v2100
    %v2167 = vsub.f32 %v2034, %v2100
    %v2168 = vsub.f32 %v2039, %v2100
    %v2169 = vsub.f32 %v2042, %v2100
    %v2170 = vsub.f32 %v2047, %v2100
    %v2171 = vsub.f32 %v2050, %v2100
    %v2172 = vsub.f32 %v2055, %v2100
    %v2173 = vsub.f32 %v2058, %v2100
    %v2174 = vadd.f32 %v2157, 1e-05
    %v2175 = vrsqrt.pop %v2174
    %v2176 = vmul.f32 %v2158, %v2175
    %v2177 = vmul.f32 %v2159, %v2175
    %v2178 = vmul.f32 %v2160, %v2175
    %v2179 = vmul.f32 %v2161, %v2175
    %v2180 = vmul.f32 %v2162, %v2175
    %v2181 = vmul.f32 %v2163, %v2175
    %v2182 = vmul.f32 %v2164, %v2175
    %v2183 = vmul.f32 %v2165, %v2175
    %v2184 = vmul.f32 %v2166, %v2175
    %v2185 = vmul.f32 %v2167, %v2175
    %v2186 = vmul.f32 %v2168, %v2175
    %v2187 = vmul.f32 %v2169, %v2175
    %v2188 = vmul.f32 %v2170, %v2175
    %v2189 = vmul.f32 %v2171, %v2175
    %v2190 = vmul.f32 %v2172, %v2175
    %v2191 = vmul.f32 %v2173, %v2175
    %v2193 = vlaneseq
    %v2194 = vshrl.u32 %v2193, 7
    %v2195 = vsub.s32 0, %v2194
    %v2196 = vrot.slane %v2061, %v2195
    %v2198 = vmul.f32 %v2176, %v2196
    %v2199 = vmul.f32 %v2177, %v2196
    %v2200 = vmul.f32 %v2178, %v2196
    %v2201 = vmul.f32 %v2179, %v2196
    %v2202 = vmul.f32 %v2180, %v2196
    %v2203 = vmul.f32 %v2181, %v2196
    %v2204 = vmul.f32 %v2182, %v2196
    %v2205 = vmul.f32 %v2183, %v2196
    %v2206 = vmul.f32 %v2184, %v2196
    %v2207 = vmul.f32 %v2185, %v2196
    %v2208 = vmul.f32 %v2186, %v2196
    %v2209 = vmul.f32 %v2187, %v2196
    %v2210 = vmul.f32 %v2188, %v2196
    %v2211 = vmul.f32 %v2189, %v2196
    %v2212 = vmul.f32 %v2190, %v2196
    %v2213 = vmul.f32 %v2191, %v2196
    %v2215 = vlaneseq
    %v2216 = vshrl.u32 %v2215, 7
    %v2217 = vsub.s32 0, %v2216
    %v2218 = vrot.slane %v2062, %v2217
    %v2220 = vadd.f32 %v2198, %v2218
    %v2221 = vadd.f32 %v2199, %v2218
    %v2222 = vadd.f32 %v2200, %v2218
    %v2223 = vadd.f32 %v2201, %v2218
    %v2224 = vadd.f32 %v2202, %v2218
    %v2225 = vadd.f32 %v2203, %v2218
    %v2226 = vadd.f32 %v2204, %v2218
    %v2227 = vadd.f32 %v2205, %v2218
    %v2228 = vadd.f32 %v2206, %v2218
    %v2229 = vadd.f32 %v2207, %v2218
    %v2230 = vadd.f32 %v2208, %v2218
    %v2231 = vadd.f32 %v2209, %v2218
    %v2232 = vadd.f32 %v2210, %v2218
    %v2233 = vadd.f32 %v2211, %v2218
    %v2234 = vadd.f32 %v2212, %v2218
    %v2235 = vadd.f32 %v2213, %v2218
    %v2236 = vpack.c.bf16 %v115, %v112
    %v2237 = vpack.c.bf16 %v121, %v118
    %v2238 = vpack.c.bf16 %v127, %v124
    %v2239 = vpack.c.bf16 %v210, %v130
    %v2240 = vpack.c.bf16 %v139, %v136
    %v2241 = vpack.c.bf16 %v145, %v142
    %v2242 = vpack.c.bf16 %v151, %v148
    %v2243 = vpack.c.bf16 %v213, %v154
    %v2244 = vld [vmem:[%s3] sm:$0x3]
    %v2245 = vld [vmem:[%s4] sm:$0x1]
    %v2247 = vlaneseq
    %v2248 = vshrl.u32 %v2247, 7
    %v2249 = vsub.s32 0, %v2248
    %v2250 = vrot.slane %v2245, %v2249
    %v2253 = vsel %vm636, %v2236, 0
    %v2256 = vsel %vm636, %v2237, 0
    %v2259 = vsel %vm636, %v2238, 0
    %v2262 = vsel %vm636, %v2239, 0
    %v2265 = vsel %vm636, %v2240, 0
    %v2268 = vsel %vm636, %v2241, 0
    %v2271 = vsel %vm636, %v2242, 0
    %v2274 = vsel %vm636, %v2243, 0
    %v2277 = vsel %vm825, %v2244, 0
    %2279 = vmatprep.subr.bf16.mxu0 0
    %2280 = vmatpush1.bf16.msra.mxu0 0
    %2281 = vmatprep.subr.bf16.mxu0 0
    %2282 = vmatpush1.bf16.msra.mxu0 0
    %2283 = vmatprep.subr.bf16.mxu0 0
    %2284 = vmatpush1.bf16.msra.mxu0 0
    %2285 = vmatprep.subr.bf16.mxu0 0
    %2286 = vmatpush1.bf16.msra.mxu0 0
    %2287 = vmatprep.subr.bf16.mxu0 0
    %2288 = vmatpush1.bf16.msra.mxu0 0
    %2289 = vmatprep.subr.bf16.mxu0 0
    %2290 = vmatpush1.bf16.msra.mxu0 0
    %2291 = vmatprep.subr.bf16.mxu0 0
    %2292 = vmatpush1.bf16.msra.mxu0 0
    %2293 = vmatprep.subr.bf16.mxu0 0
    %2294 = vmatpush1.bf16.msra.mxu0 %v2277
    %2295 = vmatprep.subr.bf16.mxu0 0
    %2296 = vmatpush2.bf16.msra.mxu0 0
    %2297 = vmatprep.subr.bf16.mxu0 0
    %2298 = vmatpush2.bf16.msra.mxu0 0
    %2299 = vmatprep.subr.bf16.mxu0 0
    %2300 = vmatpush2.bf16.msra.mxu0 0
    %2301 = vmatprep.subr.bf16.mxu0 0
    %2302 = vmatpush2.bf16.msra.mxu0 0
    %2303 = vmatprep.subr.bf16.mxu0 0
    %2304 = vmatpush2.bf16.msra.mxu0 0
    %2305 = vmatprep.subr.bf16.mxu0 0
    %2306 = vmatpush2.bf16.msra.mxu0 0
    %2307 = vmatprep.subr.bf16.mxu0 0
    %2308 = vmatpush2.bf16.msra.mxu0 0
    %2309 = vmatprep.subr.bf16.mxu0 0
    %2310 = vmatpush2.bf16.msra.mxu0 0
    %2311 = vmatprep.mubr.bf16.mxu0 0
    %2312 = vmatmul.mubr.bf16.gmra.mxu0 %v2253
    %v2313 = vpop.f32.mrf.mxu0
    %v2314 = vadd.f32 %v2250, %v2313
    %v2315 = vpop.f32.mrf.mxu0
    %v2316 = vpop.f32.mrf.mxu0
    %v2317 = vadd.f32 %v2250, %v2316
    %v2318 = vpop.f32.mrf.mxu0
    %2319 = vmatprep.mubr.bf16.mxu0 0
    %2320 = vmatmul.mubr.bf16.gmra.mxu0 %v2256
    %v2321 = vpop.f32.mrf.mxu0
    %v2322 = vadd.f32 %v2250, %v2321
    %v2323 = vpop.f32.mrf.mxu0
    %v2324 = vpop.f32.mrf.mxu0
    %v2325 = vadd.f32 %v2250, %v2324
    %v2326 = vpop.f32.mrf.mxu0
    %2327 = vmatprep.mubr.bf16.mxu0 0
    %2328 = vmatmul.mubr.bf16.gmra.mxu0 %v2259
    %v2329 = vpop.f32.mrf.mxu0
    %v2330 = vadd.f32 %v2250, %v2329
    %v2331 = vpop.f32.mrf.mxu0
    %v2332 = vpop.f32.mrf.mxu0
    %v2333 = vadd.f32 %v2250, %v2332
    %v2334 = vpop.f32.mrf.mxu0
    %2335 = vmatprep.mubr.bf16.mxu0 0
    %2336 = vmatmul.mubr.bf16.gmra.mxu0 %v2262
    %v2337 = vpop.f32.mrf.mxu0
    %v2338 = vadd.f32 %v2250, %v2337
    %v2339 = vpop.f32.mrf.mxu0
    %v2340 = vpop.f32.mrf.mxu0
    %v2341 = vadd.f32 %v2250, %v2340
    %v2342 = vpop.f32.mrf.mxu0
    %2343 = vmatprep.mubr.bf16.mxu0 0
    %2344 = vmatmul.mubr.bf16.gmra.mxu0 %v2265
    %v2345 = vpop.f32.mrf.mxu0
    %v2346 = vadd.f32 %v2250, %v2345
    %v2347 = vpop.f32.mrf.mxu0
    %v2348 = vpop.f32.mrf.mxu0
    %v2349 = vadd.f32 %v2250, %v2348
    %v2350 = vpop.f32.mrf.mxu0
    %2351 = vmatprep.mubr.bf16.mxu0 0
    %2352 = vmatmul.mubr.bf16.gmra.mxu0 %v2268
    %v2353 = vpop.f32.mrf.mxu0
    %v2354 = vadd.f32 %v2250, %v2353
    %v2355 = vpop.f32.mrf.mxu0
    %v2356 = vpop.f32.mrf.mxu0
    %v2357 = vadd.f32 %v2250, %v2356
    %v2358 = vpop.f32.mrf.mxu0
    %2359 = vmatprep.mubr.bf16.mxu0 0
    %2360 = vmatmul.mubr.bf16.gmra.mxu0 %v2271
    %v2361 = vpop.f32.mrf.mxu0
    %v2362 = vadd.f32 %v2250, %v2361
    %v2363 = vpop.f32.mrf.mxu0
    %v2364 = vpop.f32.mrf.mxu0
    %v2365 = vadd.f32 %v2250, %v2364
    %v2366 = vpop.f32.mrf.mxu0
    %2367 = vmatprep.mubr.bf16.mxu0 0
    %2368 = vmatmul.mubr.bf16.gmra.mxu0 %v2274
    %v2369 = vpop.f32.mrf.mxu0
    %v2370 = vadd.f32 %v2250, %v2369
    %v2371 = vpop.f32.mrf.mxu0
    %v2372 = vpop.f32.mrf.mxu0
    %v2373 = vadd.f32 %v2250, %v2372
    %v2374 = vpop.f32.mrf.mxu0
    %2375 = vdwg.mxu0
    %v2376 = vadd.f32 %v2220, %v2314
    %v2377 = vadd.f32 %v2221, %v2317
    %v2378 = vadd.f32 %v2222, %v2322
    %v2379 = vadd.f32 %v2223, %v2325
    %v2380 = vadd.f32 %v2224, %v2330
    %v2381 = vadd.f32 %v2225, %v2333
    %v2382 = vadd.f32 %v2226, %v2338
    %v2383 = vadd.f32 %v2227, %v2341
    %v2384 = vadd.f32 %v2228, %v2346
    %v2385 = vadd.f32 %v2229, %v2349
    %v2386 = vadd.f32 %v2230, %v2354
    %v2387 = vadd.f32 %v2231, %v2357
    %v2388 = vadd.f32 %v2232, %v2362
    %v2389 = vadd.f32 %v2233, %v2365
    %v2390 = vadd.f32 %v2234, %v2370
    %v2391 = vadd.f32 %v2235, %v2373
    %v2392 = vmax.f32 %v2376, 0.0
    %v2393 = vmax.f32 %v2377, 0.0
    %v2394 = vmax.f32 %v2378, 0.0
    %v2395 = vmax.f32 %v2379, 0.0
    %v2396 = vmax.f32 %v2380, 0.0
    %v2397 = vmax.f32 %v2381, 0.0
    %v2398 = vmax.f32 %v2382, 0.0
    %v2399 = vmax.f32 %v2383, 0.0
    %v2400 = vmax.f32 %v2384, 0.0
    %v2401 = vmax.f32 %v2385, 0.0
    %v2402 = vmax.f32 %v2386, 0.0
    %v2403 = vmax.f32 %v2387, 0.0
    %v2404 = vmax.f32 %v2388, 0.0
    %v2405 = vmax.f32 %v2389, 0.0
    %v2406 = vmax.f32 %v2390, 0.0
    %v2407 = vmax.f32 %v2391, 0.0
    %2408 = vst.msk [vmem:[#allocation3] sm:$0xff] %vm653, %v2392
    %2409 = vst.msk [vmem:[#allocation3 + $0x8] sm:$0xff] %vm653, %v2393
    %2410 = vst.msk [vmem:[#allocation3 + $0x10] sm:$0xff] %vm653, %v2394
    %2411 = vst.msk [vmem:[#allocation3 + $0x18] sm:$0xff] %vm653, %v2395
    %2412 = vst.msk [vmem:[#allocation3 + $0x20] sm:$0xff] %vm653, %v2396
    %2413 = vst.msk [vmem:[#allocation3 + $0x28] sm:$0xff] %vm653, %v2397
    %2414 = vst.msk [vmem:[#allocation3 + $0x30] sm:$0xff] %vm653, %v2398
    %2415 = vst.msk [vmem:[#allocation3 + $0x38] sm:$0xff] %vm653, %v2399
    %2416 = vst.msk [vmem:[#allocation3 + $0x40] sm:$0xff] %vm653, %v2400
    %2417 = vst.msk [vmem:[#allocation3 + $0x48] sm:$0xff] %vm653, %v2401
    %2418 = vst.msk [vmem:[#allocation3 + $0x50] sm:$0xff] %vm653, %v2402
    %2419 = vst.msk [vmem:[#allocation3 + $0x58] sm:$0xff] %vm653, %v2403
    %2420 = vst.msk [vmem:[#allocation3 + $0x60] sm:$0xff] %vm653, %v2404
    %2421 = vst.msk [vmem:[#allocation3 + $0x68] sm:$0xff] %vm653, %v2405
    %2422 = vst.msk [vmem:[#allocation3 + $0x70] sm:$0xff] %vm653, %v2406
    %2423 = vst.msk [vmem:[#allocation3 + $0x78] sm:$0xff] %vm653, %v2407
    // Predicated region
    $region38: #{tpu_custom_call.1} parent=1 // pred_check
      _
    $region39: #{tpu_custom_call.1} parent=1 // pred_check_branch
      %2425 = sbr.rel (0) target = $region41
    $region40: #{tpu_custom_call.1} parent=1 // pred_region
      %s2427 = ssub.s32 2048, 2048
      %2428 = vsyncadd [#allocation4], %s2427
      %s2429 = sshll.u32 [#allocation3], 4
      %s2430 = int_to_ptr.vmem [resolvable:$true] %s2429
      %2435 = dma.vmem_to_hbm [thread:$0]  %s2430, 2048, %s9, [#allocation4], 128, 128, 8
    $region41: #{tpu_custom_call.1} parent=1 // pred_fallthru
      _
    // Predicated region
    $region42: #{tpu_custom_call.1} parent=1 // pred_check
      _
    $region43: #{tpu_custom_call.1} parent=1 // pred_check_branch
      %2437 = sbr.rel (0) target = $region45
    $region44: #{tpu_custom_call.1} parent=1 // pred_region
      %2438 = dma.done [#allocation4], 2048
    $region45: #{tpu_custom_call.1} parent=1 // pred_fallthru
      _
    %2439 = vsyncpa [#allocation4], 1

</llo_original>
